<compile_context>
chip_gen: v6e
topology: v6e:2x2x1
jax: 0.10.0
libtpu: 0.0.40
codegen_flags: <defaults>
</compile_context>

<pallas_src>
import jax
import jax.numpy as jnp
from jax.experimental import pallas as pl
from jax.experimental.pallas import tpu as pltpu

# ----------------------------- configuration -------------------------------
BATCH = 2             # batch
CIN = 3               # image channels (EfficientNet expects RGB)
H = W = 16            # small spatial size for the synthetic run
HW = H * W
SIG_C, SIG_L = 1, 256 # PPG/ECG signal shape per batch element: (SIG_C, SIG_L)
STEM_C = 16           # synthetic stem width
FEAT = 64             # synthetic analogue of base_model._fc.in_features (1280 in B0)
HIDDEN = 256          # fc1 width (hard-coded 256 in the module)
NUM_CLASSES = 5
FS = 125
CA_LEN = 50
NUM_FEATS = FEAT + 1 + CA_LEN   # == self.num_feats = fc.in_features + 1 + 50
CA_PAD = 64                     # wavelet features padded to a lane-friendly width
CLASSES_PAD = 128               # logits padded to a full 128-lane store
K_TAPS = 9 * CIN                # 27: single contraction dim for the im2col matmul


# =============================== fused Pallas kernel ========================

def _fused_forward_kernel(patches_ref, sig_ref, rr_ref, pool_ref,
                          wc_ref, bc_ref, wp_ref, bp_ref, wwave_ref,
                          w1i_ref, w1r_ref, w1c_ref, b1_ref,
                          w2_ref, b2_ref, o_ref):
    f32 = jnp.float32

    # --- synthetic stem: 3x3 SAME conv as a single (B*HW, 27) @ (27, 16) dot + swish
    y = jnp.dot(patches_ref[...], wc_ref[...], preferred_element_type=f32) + bc_ref[...]
    y = y * jax.nn.sigmoid(y)                                   # swish

    # --- pointwise conv + swish: (B*HW, 16) @ (16, 64)
    z = jnp.dot(y, wp_ref[...], preferred_element_type=f32) + bp_ref[...]
    z = z * jax.nn.sigmoid(z)                                   # swish

    # --- adaptive_avg_pool2d(1) + flatten: per-batch segment mean via pooling matrix
    pooled = jnp.dot(pool_ref[...], z, preferred_element_type=f32)        # (B, FEAT)

    # --- wavelet branch: fixed db4 DWT + linear-interp operator, F.normalize(dim=-1)
    ca_raw = jnp.dot(sig_ref[...], wwave_ref[...], preferred_element_type=f32)  # (B, 64)
    nrm = jnp.sqrt(jnp.sum(ca_raw * ca_raw, axis=-1, keepdims=True))
    ca = ca_raw / jnp.maximum(nrm, 1e-12)                       # padded cols stay zero

    # --- fc1 over the concatenated [pooled | rr | ca | pad] features (aligned splits)
    h = (jnp.dot(pooled, w1i_ref[...], preferred_element_type=f32)
         + rr_ref[...] * w1r_ref[...]
         + jnp.dot(ca, w1c_ref[...], preferred_element_type=f32)
         + b1_ref[...])
    h = jnp.maximum(h, 0.0)                                     # relu
    # TODO(synk): nn.Dropout(0.5) is implemented as eval-mode identity (no mask).

    # --- fc2, lane-dense (128-wide padded) store
    o_ref[...] = jnp.dot(h, w2_ref[...], preferred_element_type=f32) + b2_ref[...]


def fused_forward(patches, sig, rr, kp):
    vmem = pltpu.MemorySpace.VMEM
    return pl.pallas_call(
        _fused_forward_kernel,
        out_shape=jax.ShapeDtypeStruct((BATCH, CLASSES_PAD), jnp.float32),
        in_specs=[pl.BlockSpec(memory_space=vmem)] * 15,
        out_specs=pl.BlockSpec(memory_space=vmem),
    )(patches, sig, rr, kp["pool"],
      kp["wc"], kp["bc"], kp["wp"], kp["bp"], kp["wwave"],
      kp["w1i"], kp["w1r"], kp["w1c"], kp["b1"], kp["w2"], kp["b2"])


# ============================== JAX glue (non-hot-path) =====================

def _im2col_3x3_flat(x_nhwc):
    """SAME-padded 3x3 stride-1 im2col: (B,H,W,C) -> (B*H*W, 9*C), tap-major."""
    b, h, w, c = x_nhwc.shape
    xp = jnp.pad(x_nhwc, ((0, 0), (1, 1), (1, 1), (0, 0)))
    cols = [xp[:, kh:kh + h, kw:kw + w, :] for kh in range(3) for kw in range(3)]
    patches = jnp.stack(cols, axis=3)            # (B, H, W, 9, C)
    return patches.reshape(b * h * w, 9 * c)     # (B*HW, 27)


# db4 wavelet filters (pywt conventions: dec_lo = reverse(rec_lo), dec_hi = QMF of rec_lo)
_DB4_REC_LO = jnp.array(
    [0.23037781330885523, 0.7148465705525415, 0.6308807679295904,
     -0.02798376941698385, -0.18703481171888114, 0.030841381835986965,
     0.032883011666982945, -0.010597401784997278], dtype=jnp.float32)
_DB4_DEC_LO = _DB4_REC_LO[::-1]
_DB4_DEC_HI = _DB4_REC_LO * jnp.array([(-1.0) ** (k + 1) for k in range(8)],
                                      dtype=jnp.float32)


def _dwt1d(s, filt):
    """Single-level DWT step: symmetric extension, convolution, downsample by 2."""
    f = filt.shape[0]
    ext = jnp.pad(s, (f - 1, f - 1), mode="symmetric")
    full = jnp.convolve(ext, filt, mode="valid")
    return full[1::2]


def _wavelet_coeffs_single(sig_1d):
    """cA4 || cD4 of a single 1-D signal (4-level db4 wavedec, first two coeffs)."""
    a = sig_1d
    for _ in range(3):
        a = _dwt1d(a, _DB4_DEC_LO)
    ca4 = _dwt1d(a, _DB4_DEC_LO)
    cd4 = _dwt1d(a, _DB4_DEC_HI)
    return jnp.concatenate([ca4, cd4])


def _linear_interpolate(v, out_size):
    """F.interpolate(mode='linear', align_corners=False) along the last axis."""
    in_size = v.shape[-1]
    scale = in_size / out_size
    src = (jnp.arange(out_size, dtype=jnp.float32) + 0.5) * scale - 0.5
    src = jnp.clip(src, 0.0, float(in_size - 1))
    i0 = jnp.floor(src).astype(jnp.int32)
    i1 = jnp.minimum(i0 + 1, in_size - 1)
    frac = src - i0.astype(jnp.float32)
    return v[..., i0] * (1.0 - frac) + v[..., i1] * frac


def _build_wavelet_operator(sig_len, out_size):
    """The db4 DWT (cA4||cD4) + linear interp is linear in the signal: bake it into a
    (sig_len, out_size) matrix once at init by pushing the identity basis through.
    TODO(synk): exact pywt boundary/phase conventions are approximated with db4
    filters + symmetric signal extension (pywt itself is host-side and unavailable).
    """
    basis = jnp.eye(sig_len, dtype=jnp.float32)
    coeffs = jax.vmap(_wavelet_coeffs_single)(basis)     # (sig_len, 2 * len(cA4))
    return _linear_interpolate(coeffs, out_size)         # (sig_len, out_size)


def compute_rr(x_sig):
    # TODO(synk): scipy detrend/butter/filtfilt/find_peaks/welch respiratory-rate
    # estimation is host-side SciPy with no Pallas/JAX equivalent; the module's
    # exception fallback (resp_rate = 20) is produced for every batch element.
    return jnp.full((x_sig.shape[0], 1), 20.0, dtype=jnp.float32)


# ============================== parameters ==================================

def init_params(key):
    ks = jax.random.split(key, 8)
    p = {}
    p["w_stem"] = 0.1 * jax.random.normal(ks[0], (9, CIN, STEM_C), jnp.float32)
    p["b_stem"] = 0.01 * jax.random.normal(ks[1], (1, STEM_C), jnp.float32)
    p["w_pw"] = 0.1 * jax.random.normal(ks[2], (STEM_C, FEAT), jnp.float32)
    p["b_pw"] = 0.01 * jax.random.normal(ks[3], (1, FEAT), jnp.float32)
    p["w_fc1"] = (1.0 / jnp.sqrt(NUM_FEATS)) * jax.random.normal(
        ks[4], (NUM_FEATS, HIDDEN), jnp.float32)
    p["b_fc1"] = 0.01 * jax.random.normal(ks[5], (1, HIDDEN), jnp.float32)
    p["w_fc2"] = (1.0 / jnp.sqrt(HIDDEN)) * jax.random.normal(
        ks[6], (HIDDEN, NUM_CLASSES), jnp.float32)
    p["b_fc2"] = 0.01 * jax.random.normal(ks[7], (1, NUM_CLASSES), jnp.float32)
    return p


def prepare_kernel_params(p):
    """Reshape / pad / split module parameters into the lane-aligned layout consumed
    by the fused Pallas kernel. Done once, outside the jitted forward."""
    kp = {}
    kp["wc"] = p["w_stem"].reshape(K_TAPS, STEM_C)          # (27, 16), tap-major rows
    kp["bc"] = p["b_stem"]                                  # (1, 16)
    kp["wp"] = p["w_pw"]                                    # (16, 64)
    kp["bp"] = p["b_pw"]                                    # (1, 64)
    # per-batch global average pool as a (B, B*HW) block matrix
    kp["pool"] = jnp.repeat(jnp.eye(BATCH, dtype=jnp.float32), HW, axis=1) / float(HW)
    # precomputed db4 DWT + interp operator, zero-padded to 64 lanes
    wave_op = _build_wavelet_operator(SIG_L, CA_LEN)        # (256, 50)
    kp["wwave"] = jnp.pad(wave_op, ((0, 0), (0, CA_PAD - CA_LEN)))
    # fc1 split along the concatenated feature axis: [image feats | rr | ca (+pad)]
    w1 = p["w_fc1"]
    kp["w1i"] = w1[:FEAT]                                   # (64, 256)
    kp["w1r"] = w1[FEAT:FEAT + 1]                           # (1, 256)
    kp["w1c"] = jnp.pad(w1[FEAT + 1:], ((0, CA_PAD - CA_LEN), (0, 0)))   # (64, 256)
    kp["b1"] = p["b_fc1"]                                   # (1, 256)
    # fc2 padded to a full 128-lane output; sliced back in the wrapper
    kp["w2"] = jnp.pad(p["w_fc2"], ((0, 0), (0, CLASSES_PAD - NUM_CLASSES)))
    kp["b2"] = jnp.pad(p["b_fc2"], ((0, 0), (0, CLASSES_PAD - NUM_CLASSES)))
    return kp


# ================================= forward ==================================

@jax.jit
def forward(kp, x_sig, x_img_nchw):
    # x = (x[0], x[1]) in the PyTorch module: x[0] = signal, x[1] = image (NCHW).
    rr = compute_rr(x_sig)                                   # (B, 1)
    sig = x_sig[:, 0, :]                                     # channel 0, as in module
    x_nhwc = jnp.transpose(x_img_nchw, (0, 2, 3, 1))         # NCHW -> NHWC
    patches = _im2col_3x3_flat(x_nhwc)                       # (B*HW, 27)
    logits_pad = fused_forward(patches, sig, rr, kp)         # (B, 128)
    return logits_pad[:, :NUM_CLASSES]                       # (B, NUM_CLASSES)


def forward_reference(kp, x_sig, x_img_nchw):
    """Pure-JAX reference of the same math, used as a sanity check."""
    rr = compute_rr(x_sig)
    sig = x_sig[:, 0, :]
    patches = _im2col_3x3_flat(jnp.transpose(x_img_nchw, (0, 2, 3, 1)))
    y = patches @ kp["wc"] + kp["bc"]
    y = y * jax.nn.sigmoid(y)
    z = y @ kp["wp"] + kp["bp"]
    z = z * jax.nn.sigmoid(z)
    pooled = kp["pool"] @ z
    ca_raw = sig @ kp["wwave"]
    ca = ca_raw / jnp.maximum(jnp.sqrt(jnp.sum(ca_raw * ca_raw, -1, keepdims=True)), 1e-12)
    h = pooled @ kp["w1i"] + rr * kp["w1r"] + ca @ kp["w1c"] + kp["b1"]
    h = jnp.maximum(h, 0.0)
    return (h @ kp["w2"] + kp["b2"])[:, :NUM_CLASSES]


if __name__ == "__main__":
    key = jax.random.PRNGKey(0)
    kp_key, k_sig, k_img = jax.random.split(key, 3)
    params = init_params(kp_key)
    kparams = prepare_kernel_params(params)
    x_signal = jax.random.normal(k_sig, (BATCH, SIG_C, SIG_L), jnp.float32)
    x_image = jax.random.normal(k_img, (BATCH, CIN, H, W), jnp.float32)

    logits = forward(kparams, x_signal, x_image)
    jax.block_until_ready(logits)
    assert logits.shape == (BATCH, NUM_CLASSES) and logits.dtype == jnp.float32

    ref = forward_reference(kparams, x_signal, x_image)
    assert bool(jnp.allclose(logits, ref, rtol=1e-1, atol=1e-1))
    print("KERNEL_OK")
</pallas_src>

<mosaic_0001>
module attributes {stable_mosaic.version = 11 : i64} {
  func.func @_fused_forward_kernel(%arg0: memref<512x27xf32, #tpu.memory_space<vmem>>, %arg1: memref<2x256xf32, #tpu.memory_space<vmem>>, %arg2: memref<2x1xf32, #tpu.memory_space<vmem>>, %arg3: memref<2x512xf32, #tpu.memory_space<vmem>>, %arg4: memref<27x16xf32, #tpu.memory_space<vmem>>, %arg5: memref<1x16xf32, #tpu.memory_space<vmem>>, %arg6: memref<16x64xf32, #tpu.memory_space<vmem>>, %arg7: memref<1x64xf32, #tpu.memory_space<vmem>>, %arg8: memref<256x64xf32, #tpu.memory_space<vmem>>, %arg9: memref<64x256xf32, #tpu.memory_space<vmem>>, %arg10: memref<1x256xf32, #tpu.memory_space<vmem>>, %arg11: memref<64x256xf32, #tpu.memory_space<vmem>>, %arg12: memref<1x256xf32, #tpu.memory_space<vmem>>, %arg13: memref<256x128xf32, #tpu.memory_space<vmem>>, %arg14: memref<1x128xf32, #tpu.memory_space<vmem>>, %arg15: memref<2x128xf32, #tpu.memory_space<vmem>>) attributes {dimension_semantics = [], scalar_prefetch = 0 : i64, scratch_operands = 0 : i64, tpu.core_type = #tpu.core_type<tc>} {
    %c0 = arith.constant 0 : index
    %c0_0 = arith.constant 0 : index
    %0 = vector.load %arg0[%c0, %c0_0] : memref<512x27xf32, #tpu.memory_space<vmem>>, vector<512x27xf32>
    %c0_1 = arith.constant 0 : index
    %c0_2 = arith.constant 0 : index
    %1 = vector.load %arg4[%c0_1, %c0_2] : memref<27x16xf32, #tpu.memory_space<vmem>>, vector<27x16xf32>
    %cst = arith.constant dense<0.000000e+00> : vector<512x16xf32>
    %2 = tpu.matmul %0, %1, %cst {dimension_numbers = #tpu.dot_dimension_numbers<[1], [0], [0], [1], [0, 0, 1, 1], [], []>} : vector<512x27xf32>, vector<27x16xf32>, vector<512x16xf32> -> vector<512x16xf32>
    %c0_3 = arith.constant 0 : index
    %c0_4 = arith.constant 0 : index
    %3 = vector.load %arg5[%c0_3, %c0_4] : memref<1x16xf32, #tpu.memory_space<vmem>>, vector<1x16xf32>
    %4 = vector.broadcast %3 : vector<1x16xf32> to vector<512x16xf32>
    %5 = arith.addf %2, %4 : vector<512x16xf32>
    %6 = arith.negf %5 : vector<512x16xf32>
    %7 = math.exp %6 : vector<512x16xf32>
    %cst_5 = arith.constant 1.000000e+00 : f32
    %8 = vector.broadcast %cst_5 : f32 to vector<512x16xf32>
    %9 = arith.addf %8, %7 : vector<512x16xf32>
    %10 = arith.divf %8, %9 : vector<512x16xf32>
    %11 = arith.mulf %5, %10 : vector<512x16xf32>
    %c0_6 = arith.constant 0 : index
    %c0_7 = arith.constant 0 : index
    %12 = vector.load %arg6[%c0_6, %c0_7] : memref<16x64xf32, #tpu.memory_space<vmem>>, vector<16x64xf32>
    %cst_8 = arith.constant dense<0.000000e+00> : vector<512x64xf32>
    %13 = tpu.matmul %11, %12, %cst_8 {dimension_numbers = #tpu.dot_dimension_numbers<[1], [0], [0], [1], [0, 0, 1, 1], [], []>} : vector<512x16xf32>, vector<16x64xf32>, vector<512x64xf32> -> vector<512x64xf32>
    %c0_9 = arith.constant 0 : index
    %c0_10 = arith.constant 0 : index
    %14 = vector.load %arg7[%c0_9, %c0_10] : memref<1x64xf32, #tpu.memory_space<vmem>>, vector<1x64xf32>
    %15 = vector.broadcast %14 : vector<1x64xf32> to vector<512x64xf32>
    %16 = arith.addf %13, %15 : vector<512x64xf32>
    %17 = arith.negf %16 : vector<512x64xf32>
    %18 = math.exp %17 : vector<512x64xf32>
    %cst_11 = arith.constant 1.000000e+00 : f32
    %19 = vector.broadcast %cst_11 : f32 to vector<512x64xf32>
    %20 = arith.addf %19, %18 : vector<512x64xf32>
    %21 = arith.divf %19, %20 : vector<512x64xf32>
    %22 = arith.mulf %16, %21 : vector<512x64xf32>
    %c0_12 = arith.constant 0 : index
    %c0_13 = arith.constant 0 : index
    %23 = vector.load %arg3[%c0_12, %c0_13] : memref<2x512xf32, #tpu.memory_space<vmem>>, vector<2x512xf32>
    %cst_14 = arith.constant dense<0.000000e+00> : vector<2x64xf32>
    %24 = tpu.matmul %23, %22, %cst_14 {dimension_numbers = #tpu.dot_dimension_numbers<[1], [0], [0], [1], [0, 0, 1, 1], [], []>} : vector<2x512xf32>, vector<512x64xf32>, vector<2x64xf32> -> vector<2x64xf32>
    %c0_15 = arith.constant 0 : index
    %c0_16 = arith.constant 0 : index
    %25 = vector.load %arg1[%c0_15, %c0_16] : memref<2x256xf32, #tpu.memory_space<vmem>>, vector<2x256xf32>
    %c0_17 = arith.constant 0 : index
    %c0_18 = arith.constant 0 : index
    %26 = vector.load %arg8[%c0_17, %c0_18] : memref<256x64xf32, #tpu.memory_space<vmem>>, vector<256x64xf32>
    %cst_19 = arith.constant dense<0.000000e+00> : vector<2x64xf32>
    %27 = tpu.matmul %25, %26, %cst_19 {dimension_numbers = #tpu.dot_dimension_numbers<[1], [0], [0], [1], [0, 0, 1, 1], [], []>} : vector<2x256xf32>, vector<256x64xf32>, vector<2x64xf32> -> vector<2x64xf32>
    %28 = arith.mulf %27, %27 : vector<2x64xf32>
    %cst_20 = arith.constant dense<0.000000e+00> : vector<2xf32>
    %29 = vector.multi_reduction <add>, %28, %cst_20 [1] : vector<2x64xf32> to vector<2xf32>
    %30 = vector.shape_cast %29 : vector<2xf32> to vector<2x1xf32>
    %31 = math.sqrt %30 : vector<2x1xf32>
    %cst_21 = arith.constant 9.99999996E-13 : f32
    %32 = vector.broadcast %cst_21 : f32 to vector<2x1xf32>
    %33 = arith.maximumf %31, %32 : vector<2x1xf32>
    %34 = vector.broadcast %33 : vector<2x1xf32> to vector<2x64xf32>
    %35 = arith.divf %27, %34 : vector<2x64xf32>
    %c0_22 = arith.constant 0 : index
    %c0_23 = arith.constant 0 : index
    %36 = vector.load %arg9[%c0_22, %c0_23] : memref<64x256xf32, #tpu.memory_space<vmem>>, vector<64x256xf32>
    %cst_24 = arith.constant dense<0.000000e+00> : vector<2x256xf32>
    %37 = tpu.matmul %24, %36, %cst_24 {dimension_numbers = #tpu.dot_dimension_numbers<[1], [0], [0], [1], [0, 0, 1, 1], [], []>} : vector<2x64xf32>, vector<64x256xf32>, vector<2x256xf32> -> vector<2x256xf32>
    %c0_25 = arith.constant 0 : index
    %c0_26 = arith.constant 0 : index
    %38 = vector.load %arg2[%c0_25, %c0_26] : memref<2x1xf32, #tpu.memory_space<vmem>>, vector<2x1xf32>
    %c0_27 = arith.constant 0 : index
    %c0_28 = arith.constant 0 : index
    %39 = vector.load %arg10[%c0_27, %c0_28] : memref<1x256xf32, #tpu.memory_space<vmem>>, vector<1x256xf32>
    %40 = vector.broadcast %38 : vector<2x1xf32> to vector<2x256xf32>
    %41 = vector.broadcast %39 : vector<1x256xf32> to vector<2x256xf32>
    %42 = arith.mulf %40, %41 : vector<2x256xf32>
    %43 = arith.addf %37, %42 : vector<2x256xf32>
    %c0_29 = arith.constant 0 : index
    %c0_30 = arith.constant 0 : index
    %44 = vector.load %arg11[%c0_29, %c0_30] : memref<64x256xf32, #tpu.memory_space<vmem>>, vector<64x256xf32>
    %cst_31 = arith.constant dense<0.000000e+00> : vector<2x256xf32>
    %45 = tpu.matmul %35, %44, %cst_31 {dimension_numbers = #tpu.dot_dimension_numbers<[1], [0], [0], [1], [0, 0, 1, 1], [], []>} : vector<2x64xf32>, vector<64x256xf32>, vector<2x256xf32> -> vector<2x256xf32>
    %46 = arith.addf %43, %45 : vector<2x256xf32>
    %c0_32 = arith.constant 0 : index
    %c0_33 = arith.constant 0 : index
    %47 = vector.load %arg12[%c0_32, %c0_33] : memref<1x256xf32, #tpu.memory_space<vmem>>, vector<1x256xf32>
    %48 = vector.broadcast %47 : vector<1x256xf32> to vector<2x256xf32>
    %49 = arith.addf %46, %48 : vector<2x256xf32>
    %cst_34 = arith.constant 0.000000e+00 : f32
    %50 = vector.broadcast %cst_34 : f32 to vector<2x256xf32>
    %51 = arith.maximumf %49, %50 : vector<2x256xf32>
    %c0_35 = arith.constant 0 : index
    %c0_36 = arith.constant 0 : index
    %52 = vector.load %arg13[%c0_35, %c0_36] : memref<256x128xf32, #tpu.memory_space<vmem>>, vector<256x128xf32>
    %cst_37 = arith.constant dense<0.000000e+00> : vector<2x128xf32>
    %53 = tpu.matmul %51, %52, %cst_37 {dimension_numbers = #tpu.dot_dimension_numbers<[1], [0], [0], [1], [0, 0, 1, 1], [], []>} : vector<2x256xf32>, vector<256x128xf32>, vector<2x128xf32> -> vector<2x128xf32>
    %c0_38 = arith.constant 0 : index
    %c0_39 = arith.constant 0 : index
    %54 = vector.load %arg14[%c0_38, %c0_39] : memref<1x128xf32, #tpu.memory_space<vmem>>, vector<1x128xf32>
    %55 = vector.broadcast %54 : vector<1x128xf32> to vector<2x128xf32>
    %56 = arith.addf %53, %55 : vector<2x128xf32>
    %c0_40 = arith.constant 0 : index
    %c0_41 = arith.constant 0 : index
    %57 = vector.load %arg15[%c0_40, %c0_41] : memref<2x128xf32, #tpu.memory_space<vmem>>, vector<2x128xf32>
    tpu.vector_store %arg15[%c0_40, %c0_41], %56 {strides = array<i32>} : memref<2x128xf32, #tpu.memory_space<vmem>>, vector<2x128xf32>,
    return
  }
}

</mosaic_0001>

<llo_original>
// kernel: forward.1
$region0: #{forward.1}
  #allocation0 [shape = 'u32[]', space=smem, size = 0x4, offset = 0x4, fixed_abs, tag = 'smem constant byte address 0x4 - core index']
  #allocation1 [shape = 'u32[144,128]{1,0:T(1,128)}', space=vmem, size = 0x12000, scoped, tag = 'internal scratch']
  %s0 = inlined_call_operand.vmem [shape: f32[512,27], index: 0, kind: input, shape index: {}]
  %s1 = inlined_call_operand.vmem [shape: f32[2,256], index: 1, kind: input, shape index: {}]
  %s2 = inlined_call_operand.vmem [shape: f32[2,1], index: 2, kind: input, shape index: {}]
  %s3 = inlined_call_operand.vmem [shape: f32[2,512], index: 3, kind: input, shape index: {}]
  %s4 = inlined_call_operand.vmem [shape: f32[27,16], index: 4, kind: input, shape index: {}]
  %s5 = inlined_call_operand.vmem [shape: f32[1,16], index: 5, kind: input, shape index: {}]
  %s6 = inlined_call_operand.vmem [shape: f32[16,64], index: 6, kind: input, shape index: {}]
  %s7 = inlined_call_operand.vmem [shape: f32[1,64], index: 7, kind: input, shape index: {}]
  %s8 = inlined_call_operand.vmem [shape: f32[256,64], index: 8, kind: input, shape index: {}]
  %s9 = inlined_call_operand.vmem [shape: f32[64,256], index: 9, kind: input, shape index: {}]
  %s10 = inlined_call_operand.vmem [shape: f32[1,256], index: 10, kind: input, shape index: {}]
  %s11 = inlined_call_operand.vmem [shape: f32[64,256], index: 11, kind: input, shape index: {}]
  %s12 = inlined_call_operand.vmem [shape: f32[1,256], index: 12, kind: input, shape index: {}]
  %s13 = inlined_call_operand.vmem [shape: f32[256,128], index: 13, kind: input, shape index: {}]
  %s14 = inlined_call_operand.vmem [shape: f32[1,128], index: 14, kind: input, shape index: {}]
  %s15 = inlined_call_operand.hbm [shape: f32[2,128], index: 15, kind: output, shape index: {}]
  %s16 = sld [smem:[#allocation0]]
  $region70: #{forward.1} parent=0
    _
  %s18 = ssub.s32 1, %s16
  %s19 = scalar_select 0, %s18, %s16
  $region1: #{forward.1} parent=0
    #allocation2 [shape = 'u8[1024]{0}', space=vmem, size = 0x400, scoped, tag = 'output window, operand 0, single buffered']
    #allocation3 [shape = 's32[1]{0}', space=sflag, size = 0x4, scoped, tag = 'scoped memory for forward.1']
    %20 = vsyncpa [#allocation3], 0
    // Predicated region
    $region2: #{forward.1} parent=1 // pred_check
      _
    $region3: #{forward.1} parent=1 // pred_check_branch
      %22 = sbr.rel (0) target = $region5
    $region4: #{forward.1} parent=1 // pred_region
      _
    $region5: #{forward.1} parent=1 // pred_fallthru
      _
    // Predicated region
    $region6: #{forward.1} parent=1 // pred_check
      _
    $region7: #{forward.1} parent=1 // pred_check_branch
      %24 = sbr.rel (0) target = $region9
    $region8: #{forward.1} parent=1 // pred_region
      _
    $region9: #{forward.1} parent=1 // pred_fallthru
      _
    // Predicated region
    $region10: #{forward.1} parent=1 // pred_check
      _
    $region11: #{forward.1} parent=1 // pred_check_branch
      %26 = sbr.rel (0) target = $region13
    $region12: #{forward.1} parent=1 // pred_region
      _
    $region13: #{forward.1} parent=1 // pred_fallthru
      _
    // Predicated region
    $region14: #{forward.1} parent=1 // pred_check
      _
    $region15: #{forward.1} parent=1 // pred_check_branch
      %28 = sbr.rel (0) target = $region17
    $region16: #{forward.1} parent=1 // pred_region
      _
    $region17: #{forward.1} parent=1 // pred_fallthru
      _
    // Predicated region
    $region18: #{forward.1} parent=1 // pred_check
      _
    $region19: #{forward.1} parent=1 // pred_check_branch
      %30 = sbr.rel (0) target = $region21
    $region20: #{forward.1} parent=1 // pred_region
      _
    $region21: #{forward.1} parent=1 // pred_fallthru
      _
    // Predicated region
    $region22: #{forward.1} parent=1 // pred_check
      _
    $region23: #{forward.1} parent=1 // pred_check_branch
      %32 = sbr.rel (0) target = $region25
    $region24: #{forward.1} parent=1 // pred_region
      _
    $region25: #{forward.1} parent=1 // pred_fallthru
      _
    // Predicated region
    $region26: #{forward.1} parent=1 // pred_check
      _
    $region27: #{forward.1} parent=1 // pred_check_branch
      %34 = sbr.rel (0) target = $region29
    $region28: #{forward.1} parent=1 // pred_region
      _
    $region29: #{forward.1} parent=1 // pred_fallthru
      _
    // Predicated region
    $region30: #{forward.1} parent=1 // pred_check
      _
    $region31: #{forward.1} parent=1 // pred_check_branch
      %36 = sbr.rel (0) target = $region33
    $region32: #{forward.1} parent=1 // pred_region
      _
    $region33: #{forward.1} parent=1 // pred_fallthru
      _
    // Predicated region
    $region34: #{forward.1} parent=1 // pred_check
      _
    $region35: #{forward.1} parent=1 // pred_check_branch
      %38 = sbr.rel (0) target = $region37
    $region36: #{forward.1} parent=1 // pred_region
      _
    $region37: #{forward.1} parent=1 // pred_fallthru
      _
    // Predicated region
    $region38: #{forward.1} parent=1 // pred_check
      _
    $region39: #{forward.1} parent=1 // pred_check_branch
      %40 = sbr.rel (0) target = $region41
    $region40: #{forward.1} parent=1 // pred_region
      _
    $region41: #{forward.1} parent=1 // pred_fallthru
      _
    // Predicated region
    $region42: #{forward.1} parent=1 // pred_check
      _
    $region43: #{forward.1} parent=1 // pred_check_branch
      %42 = sbr.rel (0) target = $region45
    $region44: #{forward.1} parent=1 // pred_region
      _
    $region45: #{forward.1} parent=1 // pred_fallthru
      _
    // Predicated region
    $region46: #{forward.1} parent=1 // pred_check
      _
    $region47: #{forward.1} parent=1 // pred_check_branch
      %44 = sbr.rel (0) target = $region49
    $region48: #{forward.1} parent=1 // pred_region
      _
    $region49: #{forward.1} parent=1 // pred_fallthru
      _
    // Predicated region
    $region50: #{forward.1} parent=1 // pred_check
      _
    $region51: #{forward.1} parent=1 // pred_check_branch
      %46 = sbr.rel (0) target = $region53
    $region52: #{forward.1} parent=1 // pred_region
      _
    $region53: #{forward.1} parent=1 // pred_fallthru
      _
    // Predicated region
    $region54: #{forward.1} parent=1 // pred_check
      _
    $region55: #{forward.1} parent=1 // pred_check_branch
      %48 = sbr.rel (0) target = $region57
    $region56: #{forward.1} parent=1 // pred_region
      _
    $region57: #{forward.1} parent=1 // pred_fallthru
      _
    // Predicated region
    $region58: #{forward.1} parent=1 // pred_check
      _
    $region59: #{forward.1} parent=1 // pred_check_branch
      %50 = sbr.rel (0) target = $region61
    $region60: #{forward.1} parent=1 // pred_region
      _
    $region61: #{forward.1} parent=1 // pred_fallthru
      _
    %v51 = vld [vmem:[%s0] sm:$0xff]
    %v52 = vld [vmem:[%s0 + $0x8] sm:$0xff]
    %v53 = vld [vmem:[%s0 + $0x10] sm:$0xff]
    %v54 = vld [vmem:[%s0 + $0x18] sm:$0xff]
    %v55 = vld [vmem:[%s0 + $0x20] sm:$0xff]
    %v56 = vld [vmem:[%s0 + $0x28] sm:$0xff]
    %v57 = vld [vmem:[%s0 + $0x30] sm:$0xff]
    %v58 = vld [vmem:[%s0 + $0x38] sm:$0xff]
    %v59 = vld [vmem:[%s0 + $0x40] sm:$0xff]
    %v60 = vld [vmem:[%s0 + $0x48] sm:$0xff]
    %v61 = vld [vmem:[%s0 + $0x50] sm:$0xff]
    %v62 = vld [vmem:[%s0 + $0x58] sm:$0xff]
    %v63 = vld [vmem:[%s0 + $0x60] sm:$0xff]
    %v64 = vld [vmem:[%s0 + $0x68] sm:$0xff]
    %v65 = vld [vmem:[%s0 + $0x70] sm:$0xff]
    %v66 = vld [vmem:[%s0 + $0x78] sm:$0xff]
    %v67 = vld [vmem:[%s0 + $0x80] sm:$0xff]
    %v68 = vld [vmem:[%s0 + $0x88] sm:$0xff]
    %v69 = vld [vmem:[%s0 + $0x90] sm:$0xff]
    %v70 = vld [vmem:[%s0 + $0x98] sm:$0xff]
    %v71 = vld [vmem:[%s0 + $0xa0] sm:$0xff]
    %v72 = vld [vmem:[%s0 + $0xa8] sm:$0xff]
    %v73 = vld [vmem:[%s0 + $0xb0] sm:$0xff]
    %v74 = vld [vmem:[%s0 + $0xb8] sm:$0xff]
    %v75 = vld [vmem:[%s0 + $0xc0] sm:$0xff]
    %v76 = vld [vmem:[%s0 + $0xc8] sm:$0xff]
    %v77 = vld [vmem:[%s0 + $0xd0] sm:$0xff]
    %v78 = vld [vmem:[%s0 + $0xd8] sm:$0xff]
    %v79 = vld [vmem:[%s0 + $0xe0] sm:$0xff]
    %v80 = vld [vmem:[%s0 + $0xe8] sm:$0xff]
    %v81 = vld [vmem:[%s0 + $0xf0] sm:$0xff]
    %v82 = vld [vmem:[%s0 + $0xf8] sm:$0xff]
    %v83 = vld [vmem:[%s0 + $0x100] sm:$0xff]
    %v84 = vld [vmem:[%s0 + $0x108] sm:$0xff]
    %v85 = vld [vmem:[%s0 + $0x110] sm:$0xff]
    %v86 = vld [vmem:[%s0 + $0x118] sm:$0xff]
    %v87 = vld [vmem:[%s0 + $0x120] sm:$0xff]
    %v88 = vld [vmem:[%s0 + $0x128] sm:$0xff]
    %v89 = vld [vmem:[%s0 + $0x130] sm:$0xff]
    %v90 = vld [vmem:[%s0 + $0x138] sm:$0xff]
    %v91 = vld [vmem:[%s0 + $0x140] sm:$0xff]
    %v92 = vld [vmem:[%s0 + $0x148] sm:$0xff]
    %v93 = vld [vmem:[%s0 + $0x150] sm:$0xff]
    %v94 = vld [vmem:[%s0 + $0x158] sm:$0xff]
    %v95 = vld [vmem:[%s0 + $0x160] sm:$0xff]
    %v96 = vld [vmem:[%s0 + $0x168] sm:$0xff]
    %v97 = vld [vmem:[%s0 + $0x170] sm:$0xff]
    %v98 = vld [vmem:[%s0 + $0x178] sm:$0xff]
    %v99 = vld [vmem:[%s0 + $0x180] sm:$0xff]
    %v100 = vld [vmem:[%s0 + $0x188] sm:$0xff]
    %v101 = vld [vmem:[%s0 + $0x190] sm:$0xff]
    %v102 = vld [vmem:[%s0 + $0x198] sm:$0xff]
    %v103 = vld [vmem:[%s0 + $0x1a0] sm:$0xff]
    %v104 = vld [vmem:[%s0 + $0x1a8] sm:$0xff]
    %v105 = vld [vmem:[%s0 + $0x1b0] sm:$0xff]
    %v106 = vld [vmem:[%s0 + $0x1b8] sm:$0xff]
    %v107 = vld [vmem:[%s0 + $0x1c0] sm:$0xff]
    %v108 = vld [vmem:[%s0 + $0x1c8] sm:$0xff]
    %v109 = vld [vmem:[%s0 + $0x1d0] sm:$0xff]
    %v110 = vld [vmem:[%s0 + $0x1d8] sm:$0xff]
    %v111 = vld [vmem:[%s0 + $0x1e0] sm:$0xff]
    %v112 = vld [vmem:[%s0 + $0x1e8] sm:$0xff]
    %v113 = vld [vmem:[%s0 + $0x1f0] sm:$0xff]
    %v114 = vld [vmem:[%s0 + $0x1f8] sm:$0xff]
    %v115 = vld [vmem:[%s4] sm:$0xff]
    %v116 = vld [vmem:[%s4 + $0x8] sm:$0xff]
    %v117 = vld [vmem:[%s4 + $0x10] sm:$0xff]
    %v118 = vld [vmem:[%s4 + $0x18] sm:$0x7]
    %v119 = vld [vmem:[%s5] sm:$0x1]
    %v121 = vlaneseq
    %v122 = vshrl.u32 %v121, 7
    %v123 = vsub.s32 0, %v122
    %v124 = vrot.slane %v119, %v123
    %vm126 = vcmask 220160
    %v128 = vsel %vm126, %v51, 0
    %v131 = vsel %vm126, %v52, 0
    %v134 = vsel %vm126, %v53, 0
    %v137 = vsel %vm126, %v54, 0
    %v140 = vsel %vm126, %v55, 0
    %v143 = vsel %vm126, %v56, 0
    %v146 = vsel %vm126, %v57, 0
    %v149 = vsel %vm126, %v58, 0
    %v152 = vsel %vm126, %v59, 0
    %v155 = vsel %vm126, %v60, 0
    %v158 = vsel %vm126, %v61, 0
    %v161 = vsel %vm126, %v62, 0
    %v164 = vsel %vm126, %v63, 0
    %v167 = vsel %vm126, %v64, 0
    %v170 = vsel %vm126, %v65, 0
    %v173 = vsel %vm126, %v66, 0
    %v176 = vsel %vm126, %v67, 0
    %v179 = vsel %vm126, %v68, 0
    %v182 = vsel %vm126, %v69, 0
    %v185 = vsel %vm126, %v70, 0
    %v188 = vsel %vm126, %v71, 0
    %v191 = vsel %vm126, %v72, 0
    %v194 = vsel %vm126, %v73, 0
    %v197 = vsel %vm126, %v74, 0
    %v200 = vsel %vm126, %v75, 0
    %v203 = vsel %vm126, %v76, 0
    %v206 = vsel %vm126, %v77, 0
    %v209 = vsel %vm126, %v78, 0
    %v212 = vsel %vm126, %v79, 0
    %v215 = vsel %vm126, %v80, 0
    %v218 = vsel %vm126, %v81, 0
    %v221 = vsel %vm126, %v82, 0
    %v224 = vsel %vm126, %v83, 0
    %v227 = vsel %vm126, %v84, 0
    %v230 = vsel %vm126, %v85, 0
    %v233 = vsel %vm126, %v86, 0
    %v236 = vsel %vm126, %v87, 0
    %v239 = vsel %vm126, %v88, 0
    %v242 = vsel %vm126, %v89, 0
    %v245 = vsel %vm126, %v90, 0
    %v248 = vsel %vm126, %v91, 0
    %v251 = vsel %vm126, %v92, 0
    %v254 = vsel %vm126, %v93, 0
    %v257 = vsel %vm126, %v94, 0
    %v260 = vsel %vm126, %v95, 0
    %v263 = vsel %vm126, %v96, 0
    %v266 = vsel %vm126, %v97, 0
    %v269 = vsel %vm126, %v98, 0
    %v272 = vsel %vm126, %v99, 0
    %v275 = vsel %vm126, %v100, 0
    %v278 = vsel %vm126, %v101, 0
    %v281 = vsel %vm126, %v102, 0
    %v284 = vsel %vm126, %v103, 0
    %v287 = vsel %vm126, %v104, 0
    %v290 = vsel %vm126, %v105, 0
    %v293 = vsel %vm126, %v106, 0
    %v296 = vsel %vm126, %v107, 0
    %v299 = vsel %vm126, %v108, 0
    %v302 = vsel %vm126, %v109, 0
    %v305 = vsel %vm126, %v110, 0
    %v308 = vsel %vm126, %v111, 0
    %v311 = vsel %vm126, %v112, 0
    %v314 = vsel %vm126, %v113, 0
    %v317 = vsel %vm126, %v114, 0
    %vm319 = vcmask 1042432
    %v321 = vsel %vm319, %v118, 0
    %323 = vmatprep.subr.mxu0 0.0
    %324 = vmatpush1.msra.mxu0 0.0
    %325 = vmatprep.subr.mxu0 0.0
    %326 = vmatpush1.msra.mxu0 0.0
    %327 = vmatprep.subr.mxu0 0.0
    %328 = vmatpush1.msra.mxu0 0.0
    %329 = vmatprep.subr.mxu0 0.0
    %330 = vmatpush1.msra.mxu0 0.0
    %331 = vmatprep.subr.mxu0 0.0
    %332 = vmatpush1.msra.mxu0 0.0
    %333 = vmatprep.subr.mxu0 0.0
    %334 = vmatpush1.msra.mxu0 0.0
    %335 = vmatprep.subr.mxu0 0.0
    %336 = vmatpush1.msra.mxu0 0.0
    %337 = vmatprep.subr.mxu0 0.0
    %338 = vmatpush1.msra.mxu0 0.0
    %339 = vmatprep.subr.mxu0 0.0
    %340 = vmatpush1.msra.mxu0 0.0
    %341 = vmatprep.subr.mxu0 0.0
    %342 = vmatpush1.msra.mxu0 0.0
    %343 = vmatprep.subr.mxu0 0.0
    %344 = vmatpush1.msra.mxu0 0.0
    %345 = vmatprep.subr.mxu0 0.0
    %346 = vmatpush1.msra.mxu0 0.0
    %347 = vmatprep.subr.mxu0 0.0
    %348 = vmatpush1.msra.mxu0 %v321
    %349 = vmatprep.subr.mxu0 0.0
    %350 = vmatpush1.msra.mxu0 %v117
    %351 = vmatprep.subr.mxu0 0.0
    %352 = vmatpush1.msra.mxu0 %v116
    %353 = vmatprep.subr.mxu0 0.0
    %354 = vmatpush1.msra.mxu0 %v115
    %355 = vmatprep.subr.mxu0 0.0
    %356 = vmatpush2.msra.mxu0 0.0
    %357 = vmatprep.subr.mxu0 0.0
    %358 = vmatpush2.msra.mxu0 0.0
    %359 = vmatprep.subr.mxu0 0.0
    %360 = vmatpush2.msra.mxu0 0.0
    %361 = vmatprep.subr.mxu0 0.0
    %362 = vmatpush2.msra.mxu0 0.0
    %363 = vmatprep.subr.mxu0 0.0
    %364 = vmatpush2.msra.mxu0 0.0
    %365 = vmatprep.subr.mxu0 0.0
    %366 = vmatpush2.msra.mxu0 0.0
    %367 = vmatprep.subr.mxu0 0.0
    %368 = vmatpush2.msra.mxu0 0.0
    %369 = vmatprep.subr.mxu0 0.0
    %370 = vmatpush2.msra.mxu0 0.0
    %371 = vmatprep.subr.mxu0 0.0
    %372 = vmatpush2.msra.mxu0 0.0
    %373 = vmatprep.subr.mxu0 0.0
    %374 = vmatpush2.msra.mxu0 0.0
    %375 = vmatprep.subr.mxu0 0.0
    %376 = vmatpush2.msra.mxu0 0.0
    %377 = vmatprep.subr.mxu0 0.0
    %378 = vmatpush2.msra.mxu0 0.0
    %379 = vmatprep.subr.mxu0 0.0
    %380 = vmatpush2.msra.mxu0 0.0
    %381 = vmatprep.subr.mxu0 0.0
    %382 = vmatpush2.msra.mxu0 0.0
    %383 = vmatprep.subr.mxu0 0.0
    %384 = vmatpush2.msra.mxu0 0.0
    %385 = vmatprep.subr.mxu0 0.0
    %386 = vmatpush2.msra.mxu0 0.0
    %387 = vmatprep.mubr.f32.mxu0 0.0
    %388 = vmatmul.mubr.f32.gmra.mxu0 %v128
    %v389 = vpop.f32.mrf.mxu0
    %v390 = vadd.f32 %v124, %v389
    %v391 = vpop.f32.mrf.mxu0
    %392 = vmatprep.mubr.f32.mxu0 0.0
    %393 = vmatmul.mubr.f32.gmra.mxu0 %v131
    %v394 = vpop.f32.mrf.mxu0
    %v395 = vadd.f32 %v124, %v394
    %v396 = vpop.f32.mrf.mxu0
    %397 = vmatprep.mubr.f32.mxu0 0.0
    %398 = vmatmul.mubr.f32.gmra.mxu0 %v134
    %v399 = vpop.f32.mrf.mxu0
    %v400 = vadd.f32 %v124, %v399
    %v401 = vpop.f32.mrf.mxu0
    %402 = vmatprep.mubr.f32.mxu0 0.0
    %403 = vmatmul.mubr.f32.gmra.mxu0 %v137
    %v404 = vpop.f32.mrf.mxu0
    %v405 = vadd.f32 %v124, %v404
    %v406 = vpop.f32.mrf.mxu0
    %407 = vmatprep.mubr.f32.mxu0 0.0
    %408 = vmatmul.mubr.f32.gmra.mxu0 %v140
    %v409 = vpop.f32.mrf.mxu0
    %v410 = vadd.f32 %v124, %v409
    %v411 = vpop.f32.mrf.mxu0
    %412 = vmatprep.mubr.f32.mxu0 0.0
    %413 = vmatmul.mubr.f32.gmra.mxu0 %v143
    %v414 = vpop.f32.mrf.mxu0
    %v415 = vadd.f32 %v124, %v414
    %v416 = vpop.f32.mrf.mxu0
    %417 = vmatprep.mubr.f32.mxu0 0.0
    %418 = vmatmul.mubr.f32.gmra.mxu0 %v146
    %v419 = vpop.f32.mrf.mxu0
    %v420 = vadd.f32 %v124, %v419
    %v421 = vpop.f32.mrf.mxu0
    %422 = vmatprep.mubr.f32.mxu0 0.0
    %423 = vmatmul.mubr.f32.gmra.mxu0 %v149
    %v424 = vpop.f32.mrf.mxu0
    %v425 = vadd.f32 %v124, %v424
    %v426 = vpop.f32.mrf.mxu0
    %427 = vmatprep.mubr.f32.mxu0 0.0
    %428 = vmatmul.mubr.f32.gmra.mxu0 %v152
    %v429 = vpop.f32.mrf.mxu0
    %v430 = vadd.f32 %v124, %v429
    %v431 = vpop.f32.mrf.mxu0
    %432 = vmatprep.mubr.f32.mxu0 0.0
    %433 = vmatmul.mubr.f32.gmra.mxu0 %v155
    %v434 = vpop.f32.mrf.mxu0
    %v435 = vadd.f32 %v124, %v434
    %v436 = vpop.f32.mrf.mxu0
    %437 = vmatprep.mubr.f32.mxu0 0.0
    %438 = vmatmul.mubr.f32.gmra.mxu0 %v158
    %v439 = vpop.f32.mrf.mxu0
    %v440 = vadd.f32 %v124, %v439
    %v441 = vpop.f32.mrf.mxu0
    %442 = vmatprep.mubr.f32.mxu0 0.0
    %443 = vmatmul.mubr.f32.gmra.mxu0 %v161
    %v444 = vpop.f32.mrf.mxu0
    %v445 = vadd.f32 %v124, %v444
    %v446 = vpop.f32.mrf.mxu0
    %447 = vmatprep.mubr.f32.mxu0 0.0
    %448 = vmatmul.mubr.f32.gmra.mxu0 %v164
    %v449 = vpop.f32.mrf.mxu0
    %v450 = vadd.f32 %v124, %v449
    %v451 = vpop.f32.mrf.mxu0
    %452 = vmatprep.mubr.f32.mxu0 0.0
    %453 = vmatmul.mubr.f32.gmra.mxu0 %v167
    %v454 = vpop.f32.mrf.mxu0
    %v455 = vadd.f32 %v124, %v454
    %v456 = vpop.f32.mrf.mxu0
    %457 = vmatprep.mubr.f32.mxu0 0.0
    %458 = vmatmul.mubr.f32.gmra.mxu0 %v170
    %v459 = vpop.f32.mrf.mxu0
    %v460 = vadd.f32 %v124, %v459
    %v461 = vpop.f32.mrf.mxu0
    %462 = vmatprep.mubr.f32.mxu0 0.0
    %463 = vmatmul.mubr.f32.gmra.mxu0 %v173
    %v464 = vpop.f32.mrf.mxu0
    %v465 = vadd.f32 %v124, %v464
    %v466 = vpop.f32.mrf.mxu0
    %467 = vmatprep.mubr.f32.mxu0 0.0
    %468 = vmatmul.mubr.f32.gmra.mxu0 %v176
    %v469 = vpop.f32.mrf.mxu0
    %v470 = vadd.f32 %v124, %v469
    %v471 = vpop.f32.mrf.mxu0
    %472 = vmatprep.mubr.f32.mxu0 0.0
    %473 = vmatmul.mubr.f32.gmra.mxu0 %v179
    %v474 = vpop.f32.mrf.mxu0
    %v475 = vadd.f32 %v124, %v474
    %v476 = vpop.f32.mrf.mxu0
    %477 = vmatprep.mubr.f32.mxu0 0.0
    %478 = vmatmul.mubr.f32.gmra.mxu0 %v182
    %v479 = vpop.f32.mrf.mxu0
    %v480 = vadd.f32 %v124, %v479
    %v481 = vpop.f32.mrf.mxu0
    %482 = vmatprep.mubr.f32.mxu0 0.0
    %483 = vmatmul.mubr.f32.gmra.mxu0 %v185
    %v484 = vpop.f32.mrf.mxu0
    %v485 = vadd.f32 %v124, %v484
    %v486 = vpop.f32.mrf.mxu0
    %487 = vmatprep.mubr.f32.mxu0 0.0
    %488 = vmatmul.mubr.f32.gmra.mxu0 %v188
    %v489 = vpop.f32.mrf.mxu0
    %v490 = vadd.f32 %v124, %v489
    %v491 = vpop.f32.mrf.mxu0
    %492 = vmatprep.mubr.f32.mxu0 0.0
    %493 = vmatmul.mubr.f32.gmra.mxu0 %v191
    %v494 = vpop.f32.mrf.mxu0
    %v495 = vadd.f32 %v124, %v494
    %v496 = vpop.f32.mrf.mxu0
    %497 = vmatprep.mubr.f32.mxu0 0.0
    %498 = vmatmul.mubr.f32.gmra.mxu0 %v194
    %v499 = vpop.f32.mrf.mxu0
    %v500 = vadd.f32 %v124, %v499
    %v501 = vpop.f32.mrf.mxu0
    %502 = vmatprep.mubr.f32.mxu0 0.0
    %503 = vmatmul.mubr.f32.gmra.mxu0 %v197
    %v504 = vpop.f32.mrf.mxu0
    %v505 = vadd.f32 %v124, %v504
    %v506 = vpop.f32.mrf.mxu0
    %507 = vmatprep.mubr.f32.mxu0 0.0
    %508 = vmatmul.mubr.f32.gmra.mxu0 %v200
    %v509 = vpop.f32.mrf.mxu0
    %v510 = vadd.f32 %v124, %v509
    %v511 = vpop.f32.mrf.mxu0
    %512 = vmatprep.mubr.f32.mxu0 0.0
    %513 = vmatmul.mubr.f32.gmra.mxu0 %v203
    %v514 = vpop.f32.mrf.mxu0
    %v515 = vadd.f32 %v124, %v514
    %v516 = vpop.f32.mrf.mxu0
    %517 = vmatprep.mubr.f32.mxu0 0.0
    %518 = vmatmul.mubr.f32.gmra.mxu0 %v206
    %v519 = vpop.f32.mrf.mxu0
    %v520 = vadd.f32 %v124, %v519
    %v521 = vpop.f32.mrf.mxu0
    %522 = vmatprep.mubr.f32.mxu0 0.0
    %523 = vmatmul.mubr.f32.gmra.mxu0 %v209
    %v524 = vpop.f32.mrf.mxu0
    %v525 = vadd.f32 %v124, %v524
    %v526 = vpop.f32.mrf.mxu0
    %527 = vmatprep.mubr.f32.mxu0 0.0
    %528 = vmatmul.mubr.f32.gmra.mxu0 %v212
    %v529 = vpop.f32.mrf.mxu0
    %v530 = vadd.f32 %v124, %v529
    %v531 = vpop.f32.mrf.mxu0
    %532 = vmatprep.mubr.f32.mxu0 0.0
    %533 = vmatmul.mubr.f32.gmra.mxu0 %v215
    %v534 = vpop.f32.mrf.mxu0
    %v535 = vadd.f32 %v124, %v534
    %v536 = vpop.f32.mrf.mxu0
    %537 = vmatprep.mubr.f32.mxu0 0.0
    %538 = vmatmul.mubr.f32.gmra.mxu0 %v218
    %v539 = vpop.f32.mrf.mxu0
    %v540 = vadd.f32 %v124, %v539
    %v541 = vpop.f32.mrf.mxu0
    %542 = vmatprep.mubr.f32.mxu0 0.0
    %543 = vmatmul.mubr.f32.gmra.mxu0 %v221
    %v544 = vpop.f32.mrf.mxu0
    %v545 = vadd.f32 %v124, %v544
    %v546 = vpop.f32.mrf.mxu0
    %547 = vmatprep.mubr.f32.mxu0 0.0
    %548 = vmatmul.mubr.f32.gmra.mxu0 %v224
    %v549 = vpop.f32.mrf.mxu0
    %v550 = vadd.f32 %v124, %v549
    %v551 = vpop.f32.mrf.mxu0
    %552 = vmatprep.mubr.f32.mxu0 0.0
    %553 = vmatmul.mubr.f32.gmra.mxu0 %v227
    %v554 = vpop.f32.mrf.mxu0
    %v555 = vadd.f32 %v124, %v554
    %v556 = vpop.f32.mrf.mxu0
    %557 = vmatprep.mubr.f32.mxu0 0.0
    %558 = vmatmul.mubr.f32.gmra.mxu0 %v230
    %v559 = vpop.f32.mrf.mxu0
    %v560 = vadd.f32 %v124, %v559
    %v561 = vpop.f32.mrf.mxu0
    %562 = vmatprep.mubr.f32.mxu0 0.0
    %563 = vmatmul.mubr.f32.gmra.mxu0 %v233
    %v564 = vpop.f32.mrf.mxu0
    %v565 = vadd.f32 %v124, %v564
    %v566 = vpop.f32.mrf.mxu0
    %567 = vmatprep.mubr.f32.mxu0 0.0
    %568 = vmatmul.mubr.f32.gmra.mxu0 %v236
    %v569 = vpop.f32.mrf.mxu0
    %v570 = vadd.f32 %v124, %v569
    %v571 = vpop.f32.mrf.mxu0
    %572 = vmatprep.mubr.f32.mxu0 0.0
    %573 = vmatmul.mubr.f32.gmra.mxu0 %v239
    %v574 = vpop.f32.mrf.mxu0
    %v575 = vadd.f32 %v124, %v574
    %v576 = vpop.f32.mrf.mxu0
    %577 = vmatprep.mubr.f32.mxu0 0.0
    %578 = vmatmul.mubr.f32.gmra.mxu0 %v242
    %v579 = vpop.f32.mrf.mxu0
    %v580 = vadd.f32 %v124, %v579
    %v581 = vpop.f32.mrf.mxu0
    %582 = vmatprep.mubr.f32.mxu0 0.0
    %583 = vmatmul.mubr.f32.gmra.mxu0 %v245
    %v584 = vpop.f32.mrf.mxu0
    %v585 = vadd.f32 %v124, %v584
    %v586 = vpop.f32.mrf.mxu0
    %587 = vmatprep.mubr.f32.mxu0 0.0
    %588 = vmatmul.mubr.f32.gmra.mxu0 %v248
    %v589 = vpop.f32.mrf.mxu0
    %v590 = vadd.f32 %v124, %v589
    %v591 = vpop.f32.mrf.mxu0
    %592 = vmatprep.mubr.f32.mxu0 0.0
    %593 = vmatmul.mubr.f32.gmra.mxu0 %v251
    %v594 = vpop.f32.mrf.mxu0
    %v595 = vadd.f32 %v124, %v594
    %v596 = vpop.f32.mrf.mxu0
    %597 = vmatprep.mubr.f32.mxu0 0.0
    %598 = vmatmul.mubr.f32.gmra.mxu0 %v254
    %v599 = vpop.f32.mrf.mxu0
    %v600 = vadd.f32 %v124, %v599
    %v601 = vpop.f32.mrf.mxu0
    %602 = vmatprep.mubr.f32.mxu0 0.0
    %603 = vmatmul.mubr.f32.gmra.mxu0 %v257
    %v604 = vpop.f32.mrf.mxu0
    %v605 = vadd.f32 %v124, %v604
    %v606 = vpop.f32.mrf.mxu0
    %607 = vmatprep.mubr.f32.mxu0 0.0
    %608 = vmatmul.mubr.f32.gmra.mxu0 %v260
    %v609 = vpop.f32.mrf.mxu0
    %v610 = vadd.f32 %v124, %v609
    %v611 = vpop.f32.mrf.mxu0
    %612 = vmatprep.mubr.f32.mxu0 0.0
    %613 = vmatmul.mubr.f32.gmra.mxu0 %v263
    %v614 = vpop.f32.mrf.mxu0
    %v615 = vadd.f32 %v124, %v614
    %v616 = vpop.f32.mrf.mxu0
    %617 = vmatprep.mubr.f32.mxu0 0.0
    %618 = vmatmul.mubr.f32.gmra.mxu0 %v266
    %v619 = vpop.f32.mrf.mxu0
    %v620 = vadd.f32 %v124, %v619
    %v621 = vpop.f32.mrf.mxu0
    %622 = vmatprep.mubr.f32.mxu0 0.0
    %623 = vmatmul.mubr.f32.gmra.mxu0 %v269
    %v624 = vpop.f32.mrf.mxu0
    %v625 = vadd.f32 %v124, %v624
    %v626 = vpop.f32.mrf.mxu0
    %627 = vmatprep.mubr.f32.mxu0 0.0
    %628 = vmatmul.mubr.f32.gmra.mxu0 %v272
    %v629 = vpop.f32.mrf.mxu0
    %v630 = vadd.f32 %v124, %v629
    %v631 = vpop.f32.mrf.mxu0
    %632 = vmatprep.mubr.f32.mxu0 0.0
    %633 = vmatmul.mubr.f32.gmra.mxu0 %v275
    %v634 = vpop.f32.mrf.mxu0
    %v635 = vadd.f32 %v124, %v634
    %v636 = vpop.f32.mrf.mxu0
    %637 = vmatprep.mubr.f32.mxu0 0.0
    %638 = vmatmul.mubr.f32.gmra.mxu0 %v278
    %v639 = vpop.f32.mrf.mxu0
    %v640 = vadd.f32 %v124, %v639
    %v641 = vpop.f32.mrf.mxu0
    %642 = vmatprep.mubr.f32.mxu0 0.0
    %643 = vmatmul.mubr.f32.gmra.mxu0 %v281
    %v644 = vpop.f32.mrf.mxu0
    %v645 = vadd.f32 %v124, %v644
    %v646 = vpop.f32.mrf.mxu0
    %647 = vmatprep.mubr.f32.mxu0 0.0
    %648 = vmatmul.mubr.f32.gmra.mxu0 %v284
    %v649 = vpop.f32.mrf.mxu0
    %v650 = vadd.f32 %v124, %v649
    %v651 = vpop.f32.mrf.mxu0
    %652 = vmatprep.mubr.f32.mxu0 0.0
    %653 = vmatmul.mubr.f32.gmra.mxu0 %v287
    %v654 = vpop.f32.mrf.mxu0
    %v655 = vadd.f32 %v124, %v654
    %v656 = vpop.f32.mrf.mxu0
    %657 = vmatprep.mubr.f32.mxu0 0.0
    %658 = vmatmul.mubr.f32.gmra.mxu0 %v290
    %v659 = vpop.f32.mrf.mxu0
    %v660 = vadd.f32 %v124, %v659
    %v661 = vpop.f32.mrf.mxu0
    %662 = vmatprep.mubr.f32.mxu0 0.0
    %663 = vmatmul.mubr.f32.gmra.mxu0 %v293
    %v664 = vpop.f32.mrf.mxu0
    %v665 = vadd.f32 %v124, %v664
    %v666 = vpop.f32.mrf.mxu0
    %667 = vmatprep.mubr.f32.mxu0 0.0
    %668 = vmatmul.mubr.f32.gmra.mxu0 %v296
    %v669 = vpop.f32.mrf.mxu0
    %v670 = vadd.f32 %v124, %v669
    %v671 = vpop.f32.mrf.mxu0
    %672 = vmatprep.mubr.f32.mxu0 0.0
    %673 = vmatmul.mubr.f32.gmra.mxu0 %v299
    %v674 = vpop.f32.mrf.mxu0
    %v675 = vadd.f32 %v124, %v674
    %v676 = vpop.f32.mrf.mxu0
    %677 = vmatprep.mubr.f32.mxu0 0.0
    %678 = vmatmul.mubr.f32.gmra.mxu0 %v302
    %v679 = vpop.f32.mrf.mxu0
    %v680 = vadd.f32 %v124, %v679
    %v681 = vpop.f32.mrf.mxu0
    %682 = vmatprep.mubr.f32.mxu0 0.0
    %683 = vmatmul.mubr.f32.gmra.mxu0 %v305
    %v684 = vpop.f32.mrf.mxu0
    %v685 = vadd.f32 %v124, %v684
    %v686 = vpop.f32.mrf.mxu0
    %687 = vmatprep.mubr.f32.mxu0 0.0
    %688 = vmatmul.mubr.f32.gmra.mxu0 %v308
    %v689 = vpop.f32.mrf.mxu0
    %v690 = vadd.f32 %v124, %v689
    %v691 = vpop.f32.mrf.mxu0
    %692 = vmatprep.mubr.f32.mxu0 0.0
    %693 = vmatmul.mubr.f32.gmra.mxu0 %v311
    %v694 = vpop.f32.mrf.mxu0
    %v695 = vadd.f32 %v124, %v694
    %v696 = vpop.f32.mrf.mxu0
    %697 = vmatprep.mubr.f32.mxu0 0.0
    %698 = vmatmul.mubr.f32.gmra.mxu0 %v314
    %v699 = vpop.f32.mrf.mxu0
    %v700 = vadd.f32 %v124, %v699
    %v701 = vpop.f32.mrf.mxu0
    %702 = vmatprep.mubr.f32.mxu0 0.0
    %703 = vmatmul.mubr.f32.gmra.mxu0 %v317
    %v704 = vpop.f32.mrf.mxu0
    %v705 = vadd.f32 %v124, %v704
    %v706 = vpop.f32.mrf.mxu0
    %707 = vdwg.mxu0
    %v708 = vxor.u32 %v390, 2147483648
    %v709 = vxor.u32 %v395, 2147483648
    %v710 = vxor.u32 %v400, 2147483648
    %v711 = vxor.u32 %v405, 2147483648
    %v712 = vxor.u32 %v410, 2147483648
    %v713 = vxor.u32 %v415, 2147483648
    %v714 = vxor.u32 %v420, 2147483648
    %v715 = vxor.u32 %v425, 2147483648
    %v716 = vxor.u32 %v430, 2147483648
    %v717 = vxor.u32 %v435, 2147483648
    %v718 = vxor.u32 %v440, 2147483648
    %v719 = vxor.u32 %v445, 2147483648
    %v720 = vxor.u32 %v450, 2147483648
    %v721 = vxor.u32 %v455, 2147483648
    %v722 = vxor.u32 %v460, 2147483648
    %v723 = vxor.u32 %v465, 2147483648
    %v724 = vxor.u32 %v470, 2147483648
    %v725 = vxor.u32 %v475, 2147483648
    %v726 = vxor.u32 %v480, 2147483648
    %v727 = vxor.u32 %v485, 2147483648
    %v728 = vxor.u32 %v490, 2147483648
    %v729 = vxor.u32 %v495, 2147483648
    %v730 = vxor.u32 %v500, 2147483648
    %v731 = vxor.u32 %v505, 2147483648
    %v732 = vxor.u32 %v510, 2147483648
    %v733 = vxor.u32 %v515, 2147483648
    %v734 = vxor.u32 %v520, 2147483648
    %v735 = vxor.u32 %v525, 2147483648
    %v736 = vxor.u32 %v530, 2147483648
    %v737 = vxor.u32 %v535, 2147483648
    %v738 = vxor.u32 %v540, 2147483648
    %v739 = vxor.u32 %v545, 2147483648
    %v740 = vxor.u32 %v550, 2147483648
    %v741 = vxor.u32 %v555, 2147483648
    %v742 = vxor.u32 %v560, 2147483648
    %v743 = vxor.u32 %v565, 2147483648
    %v744 = vxor.u32 %v570, 2147483648
    %v745 = vxor.u32 %v575, 2147483648
    %v746 = vxor.u32 %v580, 2147483648
    %v747 = vxor.u32 %v585, 2147483648
    %v748 = vxor.u32 %v590, 2147483648
    %v749 = vxor.u32 %v595, 2147483648
    %v750 = vxor.u32 %v600, 2147483648
    %v751 = vxor.u32 %v605, 2147483648
    %v752 = vxor.u32 %v610, 2147483648
    %v753 = vxor.u32 %v615, 2147483648
    %v754 = vxor.u32 %v620, 2147483648
    %v755 = vxor.u32 %v625, 2147483648
    %v756 = vxor.u32 %v630, 2147483648
    %v757 = vxor.u32 %v635, 2147483648
    %v758 = vxor.u32 %v640, 2147483648
    %v759 = vxor.u32 %v645, 2147483648
    %v760 = vxor.u32 %v650, 2147483648
    %v761 = vxor.u32 %v655, 2147483648
    %v762 = vxor.u32 %v660, 2147483648
    %v763 = vxor.u32 %v665, 2147483648
    %v764 = vxor.u32 %v670, 2147483648
    %v765 = vxor.u32 %v675, 2147483648
    %v766 = vxor.u32 %v680, 2147483648
    %v767 = vxor.u32 %v685, 2147483648
    %v768 = vxor.u32 %v690, 2147483648
    %v769 = vxor.u32 %v695, 2147483648
    %v770 = vxor.u32 %v700, 2147483648
    %v771 = vxor.u32 %v705, 2147483648
    %v772 = vmul.f32 %v708, 1.442695
    %v773 = vpow.pop %v772
    %v774 = vmul.f32 %v709, 1.442695
    %v775 = vpow.pop %v774
    %v776 = vmul.f32 %v710, 1.442695
    %v777 = vpow.pop %v776
    %v778 = vmul.f32 %v711, 1.442695
    %v779 = vpow.pop %v778
    %v780 = vmul.f32 %v712, 1.442695
    %v781 = vpow.pop %v780
    %v782 = vmul.f32 %v713, 1.442695
    %v783 = vpow.pop %v782
    %v784 = vmul.f32 %v714, 1.442695
    %v785 = vpow.pop %v784
    %v786 = vmul.f32 %v715, 1.442695
    %v787 = vpow.pop %v786
    %v788 = vmul.f32 %v716, 1.442695
    %v789 = vpow.pop %v788
    %v790 = vmul.f32 %v717, 1.442695
    %v791 = vpow.pop %v790
    %v792 = vmul.f32 %v718, 1.442695
    %v793 = vpow.pop %v792
    %v794 = vmul.f32 %v719, 1.442695
    %v795 = vpow.pop %v794
    %v796 = vmul.f32 %v720, 1.442695
    %v797 = vpow.pop %v796
    %v798 = vmul.f32 %v721, 1.442695
    %v799 = vpow.pop %v798
    %v800 = vmul.f32 %v722, 1.442695
    %v801 = vpow.pop %v800
    %v802 = vmul.f32 %v723, 1.442695
    %v803 = vpow.pop %v802
    %v804 = vmul.f32 %v724, 1.442695
    %v805 = vpow.pop %v804
    %v806 = vmul.f32 %v725, 1.442695
    %v807 = vpow.pop %v806
    %v808 = vmul.f32 %v726, 1.442695
    %v809 = vpow.pop %v808
    %v810 = vmul.f32 %v727, 1.442695
    %v811 = vpow.pop %v810
    %v812 = vmul.f32 %v728, 1.442695
    %v813 = vpow.pop %v812
    %v814 = vmul.f32 %v729, 1.442695
    %v815 = vpow.pop %v814
    %v816 = vmul.f32 %v730, 1.442695
    %v817 = vpow.pop %v816
    %v818 = vmul.f32 %v731, 1.442695
    %v819 = vpow.pop %v818
    %v820 = vmul.f32 %v732, 1.442695
    %v821 = vpow.pop %v820
    %v822 = vmul.f32 %v733, 1.442695
    %v823 = vpow.pop %v822
    %v824 = vmul.f32 %v734, 1.442695
    %v825 = vpow.pop %v824
    %v826 = vmul.f32 %v735, 1.442695
    %v827 = vpow.pop %v826
    %v828 = vmul.f32 %v736, 1.442695
    %v829 = vpow.pop %v828
    %v830 = vmul.f32 %v737, 1.442695
    %v831 = vpow.pop %v830
    %v832 = vmul.f32 %v738, 1.442695
    %v833 = vpow.pop %v832
    %v834 = vmul.f32 %v739, 1.442695
    %v835 = vpow.pop %v834
    %v836 = vmul.f32 %v740, 1.442695
    %v837 = vpow.pop %v836
    %v838 = vmul.f32 %v741, 1.442695
    %v839 = vpow.pop %v838
    %v840 = vmul.f32 %v742, 1.442695
    %v841 = vpow.pop %v840
    %v842 = vmul.f32 %v743, 1.442695
    %v843 = vpow.pop %v842
    %v844 = vmul.f32 %v744, 1.442695
    %v845 = vpow.pop %v844
    %v846 = vmul.f32 %v745, 1.442695
    %v847 = vpow.pop %v846
    %v848 = vmul.f32 %v746, 1.442695
    %v849 = vpow.pop %v848
    %v850 = vmul.f32 %v747, 1.442695
    %v851 = vpow.pop %v850
    %v852 = vmul.f32 %v748, 1.442695
    %v853 = vpow.pop %v852
    %v854 = vmul.f32 %v749, 1.442695
    %v855 = vpow.pop %v854
    %v856 = vmul.f32 %v750, 1.442695
    %v857 = vpow.pop %v856
    %v858 = vmul.f32 %v751, 1.442695
    %v859 = vpow.pop %v858
    %v860 = vmul.f32 %v752, 1.442695
    %v861 = vpow.pop %v860
    %v862 = vmul.f32 %v753, 1.442695
    %v863 = vpow.pop %v862
    %v864 = vmul.f32 %v754, 1.442695
    %v865 = vpow.pop %v864
    %v866 = vmul.f32 %v755, 1.442695
    %v867 = vpow.pop %v866
    %v868 = vmul.f32 %v756, 1.442695
    %v869 = vpow.pop %v868
    %v870 = vmul.f32 %v757, 1.442695
    %v871 = vpow.pop %v870
    %v872 = vmul.f32 %v758, 1.442695
    %v873 = vpow.pop %v872
    %v874 = vmul.f32 %v759, 1.442695
    %v875 = vpow.pop %v874
    %v876 = vmul.f32 %v760, 1.442695
    %v877 = vpow.pop %v876
    %v878 = vmul.f32 %v761, 1.442695
    %v879 = vpow.pop %v878
    %v880 = vmul.f32 %v762, 1.442695
    %v881 = vpow.pop %v880
    %v882 = vmul.f32 %v763, 1.442695
    %v883 = vpow.pop %v882
    %v884 = vmul.f32 %v764, 1.442695
    %v885 = vpow.pop %v884
    %v886 = vmul.f32 %v765, 1.442695
    %v887 = vpow.pop %v886
    %v888 = vmul.f32 %v766, 1.442695
    %v889 = vpow.pop %v888
    %v890 = vmul.f32 %v767, 1.442695
    %v891 = vpow.pop %v890
    %v892 = vmul.f32 %v768, 1.442695
    %v893 = vpow.pop %v892
    %v894 = vmul.f32 %v769, 1.442695
    %v895 = vpow.pop %v894
    %v896 = vmul.f32 %v770, 1.442695
    %v897 = vpow.pop %v896
    %v898 = vmul.f32 %v771, 1.442695
    %v899 = vpow.pop %v898
    %v900 = vadd.f32 %v773, 1.0
    %v901 = vadd.f32 %v775, 1.0
    %v902 = vadd.f32 %v777, 1.0
    %v903 = vadd.f32 %v779, 1.0
    %v904 = vadd.f32 %v781, 1.0
    %v905 = vadd.f32 %v783, 1.0
    %v906 = vadd.f32 %v785, 1.0
    %v907 = vadd.f32 %v787, 1.0
    %v908 = vadd.f32 %v789, 1.0
    %v909 = vadd.f32 %v791, 1.0
    %v910 = vadd.f32 %v793, 1.0
    %v911 = vadd.f32 %v795, 1.0
    %v912 = vadd.f32 %v797, 1.0
    %v913 = vadd.f32 %v799, 1.0
    %v914 = vadd.f32 %v801, 1.0
    %v915 = vadd.f32 %v803, 1.0
    %v916 = vadd.f32 %v805, 1.0
    %v917 = vadd.f32 %v807, 1.0
    %v918 = vadd.f32 %v809, 1.0
    %v919 = vadd.f32 %v811, 1.0
    %v920 = vadd.f32 %v813, 1.0
    %v921 = vadd.f32 %v815, 1.0
    %v922 = vadd.f32 %v817, 1.0
    %v923 = vadd.f32 %v819, 1.0
    %v924 = vadd.f32 %v821, 1.0
    %v925 = vadd.f32 %v823, 1.0
    %v926 = vadd.f32 %v825, 1.0
    %v927 = vadd.f32 %v827, 1.0
    %v928 = vadd.f32 %v829, 1.0
    %v929 = vadd.f32 %v831, 1.0
    %v930 = vadd.f32 %v833, 1.0
    %v931 = vadd.f32 %v835, 1.0
    %v932 = vadd.f32 %v837, 1.0
    %v933 = vadd.f32 %v839, 1.0
    %v934 = vadd.f32 %v841, 1.0
    %v935 = vadd.f32 %v843, 1.0
    %v936 = vadd.f32 %v845, 1.0
    %v937 = vadd.f32 %v847, 1.0
    %v938 = vadd.f32 %v849, 1.0
    %v939 = vadd.f32 %v851, 1.0
    %v940 = vadd.f32 %v853, 1.0
    %v941 = vadd.f32 %v855, 1.0
    %v942 = vadd.f32 %v857, 1.0
    %v943 = vadd.f32 %v859, 1.0
    %v944 = vadd.f32 %v861, 1.0
    %v945 = vadd.f32 %v863, 1.0
    %v946 = vadd.f32 %v865, 1.0
    %v947 = vadd.f32 %v867, 1.0
    %v948 = vadd.f32 %v869, 1.0
    %v949 = vadd.f32 %v871, 1.0
    %v950 = vadd.f32 %v873, 1.0
    %v951 = vadd.f32 %v875, 1.0
    %v952 = vadd.f32 %v877, 1.0
    %v953 = vadd.f32 %v879, 1.0
    %v954 = vadd.f32 %v881, 1.0
    %v955 = vadd.f32 %v883, 1.0
    %v956 = vadd.f32 %v885, 1.0
    %v957 = vadd.f32 %v887, 1.0
    %v958 = vadd.f32 %v889, 1.0
    %v959 = vadd.f32 %v891, 1.0
    %v960 = vadd.f32 %v893, 1.0
    %v961 = vadd.f32 %v895, 1.0
    %v962 = vadd.f32 %v897, 1.0
    %v963 = vadd.f32 %v899, 1.0
    %v964 = vrcp.pop %v900
    %v965 = vmul.f32 1.0, %v964
    %v966 = vrcp.pop %v901
    %v967 = vmul.f32 1.0, %v966
    %v968 = vrcp.pop %v902
    %v969 = vmul.f32 1.0, %v968
    %v970 = vrcp.pop %v903
    %v971 = vmul.f32 1.0, %v970
    %v972 = vrcp.pop %v904
    %v973 = vmul.f32 1.0, %v972
    %v974 = vrcp.pop %v905
    %v975 = vmul.f32 1.0, %v974
    %v976 = vrcp.pop %v906
    %v977 = vmul.f32 1.0, %v976
    %v978 = vrcp.pop %v907
    %v979 = vmul.f32 1.0, %v978
    %v980 = vrcp.pop %v908
    %v981 = vmul.f32 1.0, %v980
    %v982 = vrcp.pop %v909
    %v983 = vmul.f32 1.0, %v982
    %v984 = vrcp.pop %v910
    %v985 = vmul.f32 1.0, %v984
    %v986 = vrcp.pop %v911
    %v987 = vmul.f32 1.0, %v986
    %v988 = vrcp.pop %v912
    %v989 = vmul.f32 1.0, %v988
    %v990 = vrcp.pop %v913
    %v991 = vmul.f32 1.0, %v990
    %v992 = vrcp.pop %v914
    %v993 = vmul.f32 1.0, %v992
    %v994 = vrcp.pop %v915
    %v995 = vmul.f32 1.0, %v994
    %v996 = vrcp.pop %v916
    %v997 = vmul.f32 1.0, %v996
    %v998 = vrcp.pop %v917
    %v999 = vmul.f32 1.0, %v998
    %v1000 = vrcp.pop %v918
    %v1001 = vmul.f32 1.0, %v1000
    %v1002 = vrcp.pop %v919
    %v1003 = vmul.f32 1.0, %v1002
    %v1004 = vrcp.pop %v920
    %v1005 = vmul.f32 1.0, %v1004
    %v1006 = vrcp.pop %v921
    %v1007 = vmul.f32 1.0, %v1006
    %v1008 = vrcp.pop %v922
    %v1009 = vmul.f32 1.0, %v1008
    %v1010 = vrcp.pop %v923
    %v1011 = vmul.f32 1.0, %v1010
    %v1012 = vrcp.pop %v924
    %v1013 = vmul.f32 1.0, %v1012
    %v1014 = vrcp.pop %v925
    %v1015 = vmul.f32 1.0, %v1014
    %v1016 = vrcp.pop %v926
    %v1017 = vmul.f32 1.0, %v1016
    %v1018 = vrcp.pop %v927
    %v1019 = vmul.f32 1.0, %v1018
    %v1020 = vrcp.pop %v928
    %v1021 = vmul.f32 1.0, %v1020
    %v1022 = vrcp.pop %v929
    %v1023 = vmul.f32 1.0, %v1022
    %v1024 = vrcp.pop %v930
    %v1025 = vmul.f32 1.0, %v1024
    %v1026 = vrcp.pop %v931
    %v1027 = vmul.f32 1.0, %v1026
    %v1028 = vrcp.pop %v932
    %v1029 = vmul.f32 1.0, %v1028
    %v1030 = vrcp.pop %v933
    %v1031 = vmul.f32 1.0, %v1030
    %v1032 = vrcp.pop %v934
    %v1033 = vmul.f32 1.0, %v1032
    %v1034 = vrcp.pop %v935
    %v1035 = vmul.f32 1.0, %v1034
    %v1036 = vrcp.pop %v936
    %v1037 = vmul.f32 1.0, %v1036
    %v1038 = vrcp.pop %v937
    %v1039 = vmul.f32 1.0, %v1038
    %v1040 = vrcp.pop %v938
    %v1041 = vmul.f32 1.0, %v1040
    %v1042 = vrcp.pop %v939
    %v1043 = vmul.f32 1.0, %v1042
    %v1044 = vrcp.pop %v940
    %v1045 = vmul.f32 1.0, %v1044
    %v1046 = vrcp.pop %v941
    %v1047 = vmul.f32 1.0, %v1046
    %v1048 = vrcp.pop %v942
    %v1049 = vmul.f32 1.0, %v1048
    %v1050 = vrcp.pop %v943
    %v1051 = vmul.f32 1.0, %v1050
    %v1052 = vrcp.pop %v944
    %v1053 = vmul.f32 1.0, %v1052
    %v1054 = vrcp.pop %v945
    %v1055 = vmul.f32 1.0, %v1054
    %v1056 = vrcp.pop %v946
    %v1057 = vmul.f32 1.0, %v1056
    %v1058 = vrcp.pop %v947
    %v1059 = vmul.f32 1.0, %v1058
    %v1060 = vrcp.pop %v948
    %v1061 = vmul.f32 1.0, %v1060
    %v1062 = vrcp.pop %v949
    %v1063 = vmul.f32 1.0, %v1062
    %v1064 = vrcp.pop %v950
    %v1065 = vmul.f32 1.0, %v1064
    %v1066 = vrcp.pop %v951
    %v1067 = vmul.f32 1.0, %v1066
    %v1068 = vrcp.pop %v952
    %v1069 = vmul.f32 1.0, %v1068
    %v1070 = vrcp.pop %v953
    %v1071 = vmul.f32 1.0, %v1070
    %v1072 = vrcp.pop %v954
    %v1073 = vmul.f32 1.0, %v1072
    %v1074 = vrcp.pop %v955
    %v1075 = vmul.f32 1.0, %v1074
    %v1076 = vrcp.pop %v956
    %v1077 = vmul.f32 1.0, %v1076
    %v1078 = vrcp.pop %v957
    %v1079 = vmul.f32 1.0, %v1078
    %v1080 = vrcp.pop %v958
    %v1081 = vmul.f32 1.0, %v1080
    %v1082 = vrcp.pop %v959
    %v1083 = vmul.f32 1.0, %v1082
    %v1084 = vrcp.pop %v960
    %v1085 = vmul.f32 1.0, %v1084
    %v1086 = vrcp.pop %v961
    %v1087 = vmul.f32 1.0, %v1086
    %v1088 = vrcp.pop %v962
    %v1089 = vmul.f32 1.0, %v1088
    %v1090 = vrcp.pop %v963
    %v1091 = vmul.f32 1.0, %v1090
    %v1092 = vmul.f32 %v390, %v965
    %v1093 = vmul.f32 %v395, %v967
    %v1094 = vmul.f32 %v400, %v969
    %v1095 = vmul.f32 %v405, %v971
    %v1096 = vmul.f32 %v410, %v973
    %v1097 = vmul.f32 %v415, %v975
    %v1098 = vmul.f32 %v420, %v977
    %v1099 = vmul.f32 %v425, %v979
    %v1100 = vmul.f32 %v430, %v981
    %v1101 = vmul.f32 %v435, %v983
    %v1102 = vmul.f32 %v440, %v985
    %v1103 = vmul.f32 %v445, %v987
    %v1104 = vmul.f32 %v450, %v989
    %v1105 = vmul.f32 %v455, %v991
    %v1106 = vmul.f32 %v460, %v993
    %v1107 = vmul.f32 %v465, %v995
    %v1108 = vmul.f32 %v470, %v997
    %v1109 = vmul.f32 %v475, %v999
    %v1110 = vmul.f32 %v480, %v1001
    %v1111 = vmul.f32 %v485, %v1003
    %v1112 = vmul.f32 %v490, %v1005
    %v1113 = vmul.f32 %v495, %v1007
    %v1114 = vmul.f32 %v500, %v1009
    %v1115 = vmul.f32 %v505, %v1011
    %v1116 = vmul.f32 %v510, %v1013
    %v1117 = vmul.f32 %v515, %v1015
    %v1118 = vmul.f32 %v520, %v1017
    %v1119 = vmul.f32 %v525, %v1019
    %v1120 = vmul.f32 %v530, %v1021
    %v1121 = vmul.f32 %v535, %v1023
    %v1122 = vmul.f32 %v540, %v1025
    %v1123 = vmul.f32 %v545, %v1027
    %v1124 = vmul.f32 %v550, %v1029
    %v1125 = vmul.f32 %v555, %v1031
    %v1126 = vmul.f32 %v560, %v1033
    %v1127 = vmul.f32 %v565, %v1035
    %v1128 = vmul.f32 %v570, %v1037
    %v1129 = vmul.f32 %v575, %v1039
    %v1130 = vmul.f32 %v580, %v1041
    %v1131 = vmul.f32 %v585, %v1043
    %v1132 = vmul.f32 %v590, %v1045
    %v1133 = vmul.f32 %v595, %v1047
    %v1134 = vmul.f32 %v600, %v1049
    %v1135 = vmul.f32 %v605, %v1051
    %v1136 = vmul.f32 %v610, %v1053
    %v1137 = vmul.f32 %v615, %v1055
    %v1138 = vmul.f32 %v620, %v1057
    %v1139 = vmul.f32 %v625, %v1059
    %v1140 = vmul.f32 %v630, %v1061
    %v1141 = vmul.f32 %v635, %v1063
    %v1142 = vmul.f32 %v640, %v1065
    %v1143 = vmul.f32 %v645, %v1067
    %v1144 = vmul.f32 %v650, %v1069
    %v1145 = vmul.f32 %v655, %v1071
    %v1146 = vmul.f32 %v660, %v1073
    %v1147 = vmul.f32 %v665, %v1075
    %v1148 = vmul.f32 %v670, %v1077
    %v1149 = vmul.f32 %v675, %v1079
    %v1150 = vmul.f32 %v680, %v1081
    %v1151 = vmul.f32 %v685, %v1083
    %v1152 = vmul.f32 %v690, %v1085
    %v1153 = vmul.f32 %v695, %v1087
    %v1154 = vmul.f32 %v700, %v1089
    %v1155 = vmul.f32 %v705, %v1091
    %v1156 = vld [vmem:[%s6] sm:$0xff]
    %v1157 = vld [vmem:[%s6 + $0x8] sm:$0xff]
    %v1158 = vld [vmem:[%s7] sm:$0x1]
    %v1160 = vlaneseq
    %v1161 = vshrl.u32 %v1160, 7
    %v1162 = vsub.s32 0, %v1161
    %v1163 = vrot.slane %v1158, %v1162
    %vm1165 = vcmask 130048
    %v1167 = vsel %vm1165, %v1092, 0
    %v1170 = vsel %vm1165, %v1093, 0
    %v1173 = vsel %vm1165, %v1094, 0
    %v1176 = vsel %vm1165, %v1095, 0
    %v1179 = vsel %vm1165, %v1096, 0
    %v1182 = vsel %vm1165, %v1097, 0
    %v1185 = vsel %vm1165, %v1098, 0
    %v1188 = vsel %vm1165, %v1099, 0
    %v1191 = vsel %vm1165, %v1100, 0
    %v1194 = vsel %vm1165, %v1101, 0
    %v1197 = vsel %vm1165, %v1102, 0
    %v1200 = vsel %vm1165, %v1103, 0
    %v1203 = vsel %vm1165, %v1104, 0
    %v1206 = vsel %vm1165, %v1105, 0
    %v1209 = vsel %vm1165, %v1106, 0
    %v1212 = vsel %vm1165, %v1107, 0
    %v1215 = vsel %vm1165, %v1108, 0
    %v1218 = vsel %vm1165, %v1109, 0
    %v1221 = vsel %vm1165, %v1110, 0
    %v1224 = vsel %vm1165, %v1111, 0
    %v1227 = vsel %vm1165, %v1112, 0
    %v1230 = vsel %vm1165, %v1113, 0
    %v1233 = vsel %vm1165, %v1114, 0
    %v1236 = vsel %vm1165, %v1115, 0
    %v1239 = vsel %vm1165, %v1116, 0
    %v1242 = vsel %vm1165, %v1117, 0
    %v1245 = vsel %vm1165, %v1118, 0
    %v1248 = vsel %vm1165, %v1119, 0
    %v1251 = vsel %vm1165, %v1120, 0
    %v1254 = vsel %vm1165, %v1121, 0
    %v1257 = vsel %vm1165, %v1122, 0
    %v1260 = vsel %vm1165, %v1123, 0
    %v1263 = vsel %vm1165, %v1124, 0
    %v1266 = vsel %vm1165, %v1125, 0
    %v1269 = vsel %vm1165, %v1126, 0
    %v1272 = vsel %vm1165, %v1127, 0
    %v1275 = vsel %vm1165, %v1128, 0
    %v1278 = vsel %vm1165, %v1129, 0
    %v1281 = vsel %vm1165, %v1130, 0
    %v1284 = vsel %vm1165, %v1131, 0
    %v1287 = vsel %vm1165, %v1132, 0
    %v1290 = vsel %vm1165, %v1133, 0
    %v1293 = vsel %vm1165, %v1134, 0
    %v1296 = vsel %vm1165, %v1135, 0
    %v1299 = vsel %vm1165, %v1136, 0
    %v1302 = vsel %vm1165, %v1137, 0
    %v1305 = vsel %vm1165, %v1138, 0
    %v1308 = vsel %vm1165, %v1139, 0
    %v1311 = vsel %vm1165, %v1140, 0
    %v1314 = vsel %vm1165, %v1141, 0
    %v1317 = vsel %vm1165, %v1142, 0
    %v1320 = vsel %vm1165, %v1143, 0
    %v1323 = vsel %vm1165, %v1144, 0
    %v1326 = vsel %vm1165, %v1145, 0
    %v1329 = vsel %vm1165, %v1146, 0
    %v1332 = vsel %vm1165, %v1147, 0
    %v1335 = vsel %vm1165, %v1148, 0
    %v1338 = vsel %vm1165, %v1149, 0
    %v1341 = vsel %vm1165, %v1150, 0
    %v1344 = vsel %vm1165, %v1151, 0
    %v1347 = vsel %vm1165, %v1152, 0
    %v1350 = vsel %vm1165, %v1153, 0
    %v1353 = vsel %vm1165, %v1154, 0
    %v1356 = vsel %vm1165, %v1155, 0
    %1358 = vmatprep.subr.mxu0 0.0
    %1359 = vmatpush1.msra.mxu0 0.0
    %1360 = vmatprep.subr.mxu0 0.0
    %1361 = vmatpush1.msra.mxu0 0.0
    %1362 = vmatprep.subr.mxu0 0.0
    %1363 = vmatpush1.msra.mxu0 0.0
    %1364 = vmatprep.subr.mxu0 0.0
    %1365 = vmatpush1.msra.mxu0 0.0
    %1366 = vmatprep.subr.mxu0 0.0
    %1367 = vmatpush1.msra.mxu0 0.0
    %1368 = vmatprep.subr.mxu0 0.0
    %1369 = vmatpush1.msra.mxu0 0.0
    %1370 = vmatprep.subr.mxu0 0.0
    %1371 = vmatpush1.msra.mxu0 0.0
    %1372 = vmatprep.subr.mxu0 0.0
    %1373 = vmatpush1.msra.mxu0 0.0
    %1374 = vmatprep.subr.mxu0 0.0
    %1375 = vmatpush1.msra.mxu0 0.0
    %1376 = vmatprep.subr.mxu0 0.0
    %1377 = vmatpush1.msra.mxu0 0.0
    %1378 = vmatprep.subr.mxu0 0.0
    %1379 = vmatpush1.msra.mxu0 0.0
    %1380 = vmatprep.subr.mxu0 0.0
    %1381 = vmatpush1.msra.mxu0 0.0
    %1382 = vmatprep.subr.mxu0 0.0
    %1383 = vmatpush1.msra.mxu0 0.0
    %1384 = vmatprep.subr.mxu0 0.0
    %1385 = vmatpush1.msra.mxu0 0.0
    %1386 = vmatprep.subr.mxu0 0.0
    %1387 = vmatpush1.msra.mxu0 %v1157
    %1388 = vmatprep.subr.mxu0 0.0
    %1389 = vmatpush1.msra.mxu0 %v1156
    %1390 = vmatprep.subr.mxu0 0.0
    %1391 = vmatpush2.msra.mxu0 0.0
    %1392 = vmatprep.subr.mxu0 0.0
    %1393 = vmatpush2.msra.mxu0 0.0
    %1394 = vmatprep.subr.mxu0 0.0
    %1395 = vmatpush2.msra.mxu0 0.0
    %1396 = vmatprep.subr.mxu0 0.0
    %1397 = vmatpush2.msra.mxu0 0.0
    %1398 = vmatprep.subr.mxu0 0.0
    %1399 = vmatpush2.msra.mxu0 0.0
    %1400 = vmatprep.subr.mxu0 0.0
    %1401 = vmatpush2.msra.mxu0 0.0
    %1402 = vmatprep.subr.mxu0 0.0
    %1403 = vmatpush2.msra.mxu0 0.0
    %1404 = vmatprep.subr.mxu0 0.0
    %1405 = vmatpush2.msra.mxu0 0.0
    %1406 = vmatprep.subr.mxu0 0.0
    %1407 = vmatpush2.msra.mxu0 0.0
    %1408 = vmatprep.subr.mxu0 0.0
    %1409 = vmatpush2.msra.mxu0 0.0
    %1410 = vmatprep.subr.mxu0 0.0
    %1411 = vmatpush2.msra.mxu0 0.0
    %1412 = vmatprep.subr.mxu0 0.0
    %1413 = vmatpush2.msra.mxu0 0.0
    %1414 = vmatprep.subr.mxu0 0.0
    %1415 = vmatpush2.msra.mxu0 0.0
    %1416 = vmatprep.subr.mxu0 0.0
    %1417 = vmatpush2.msra.mxu0 0.0
    %1418 = vmatprep.subr.mxu0 0.0
    %1419 = vmatpush2.msra.mxu0 0.0
    %1420 = vmatprep.subr.mxu0 0.0
    %1421 = vmatpush2.msra.mxu0 0.0
    %1422 = vmatprep.mubr.f32.mxu0 0.0
    %1423 = vmatmul.mubr.f32.gmra.mxu0 %v1167
    %v1424 = vpop.f32.mrf.mxu0
    %v1425 = vadd.f32 %v1163, %v1424
    %v1426 = vpop.f32.mrf.mxu0
    %1427 = vmatprep.mubr.f32.mxu0 0.0
    %1428 = vmatmul.mubr.f32.gmra.mxu0 %v1170
    %v1429 = vpop.f32.mrf.mxu0
    %v1430 = vadd.f32 %v1163, %v1429
    %v1431 = vpop.f32.mrf.mxu0
    %1432 = vmatprep.mubr.f32.mxu0 0.0
    %1433 = vmatmul.mubr.f32.gmra.mxu0 %v1173
    %v1434 = vpop.f32.mrf.mxu0
    %v1435 = vadd.f32 %v1163, %v1434
    %v1436 = vpop.f32.mrf.mxu0
    %1437 = vmatprep.mubr.f32.mxu0 0.0
    %1438 = vmatmul.mubr.f32.gmra.mxu0 %v1176
    %v1439 = vpop.f32.mrf.mxu0
    %v1440 = vadd.f32 %v1163, %v1439
    %v1441 = vpop.f32.mrf.mxu0
    %1442 = vmatprep.mubr.f32.mxu0 0.0
    %1443 = vmatmul.mubr.f32.gmra.mxu0 %v1179
    %v1444 = vpop.f32.mrf.mxu0
    %v1445 = vadd.f32 %v1163, %v1444
    %v1446 = vpop.f32.mrf.mxu0
    %1447 = vmatprep.mubr.f32.mxu0 0.0
    %1448 = vmatmul.mubr.f32.gmra.mxu0 %v1182
    %v1449 = vpop.f32.mrf.mxu0
    %v1450 = vadd.f32 %v1163, %v1449
    %v1451 = vpop.f32.mrf.mxu0
    %1452 = vmatprep.mubr.f32.mxu0 0.0
    %1453 = vmatmul.mubr.f32.gmra.mxu0 %v1185
    %v1454 = vpop.f32.mrf.mxu0
    %v1455 = vadd.f32 %v1163, %v1454
    %v1456 = vpop.f32.mrf.mxu0
    %1457 = vmatprep.mubr.f32.mxu0 0.0
    %1458 = vmatmul.mubr.f32.gmra.mxu0 %v1188
    %v1459 = vpop.f32.mrf.mxu0
    %v1460 = vadd.f32 %v1163, %v1459
    %v1461 = vpop.f32.mrf.mxu0
    %1462 = vmatprep.mubr.f32.mxu0 0.0
    %1463 = vmatmul.mubr.f32.gmra.mxu0 %v1191
    %v1464 = vpop.f32.mrf.mxu0
    %v1465 = vadd.f32 %v1163, %v1464
    %v1466 = vpop.f32.mrf.mxu0
    %1467 = vmatprep.mubr.f32.mxu0 0.0
    %1468 = vmatmul.mubr.f32.gmra.mxu0 %v1194
    %v1469 = vpop.f32.mrf.mxu0
    %v1470 = vadd.f32 %v1163, %v1469
    %v1471 = vpop.f32.mrf.mxu0
    %1472 = vmatprep.mubr.f32.mxu0 0.0
    %1473 = vmatmul.mubr.f32.gmra.mxu0 %v1197
    %v1474 = vpop.f32.mrf.mxu0
    %v1475 = vadd.f32 %v1163, %v1474
    %v1476 = vpop.f32.mrf.mxu0
    %1477 = vmatprep.mubr.f32.mxu0 0.0
    %1478 = vmatmul.mubr.f32.gmra.mxu0 %v1200
    %v1479 = vpop.f32.mrf.mxu0
    %v1480 = vadd.f32 %v1163, %v1479
    %v1481 = vpop.f32.mrf.mxu0
    %1482 = vmatprep.mubr.f32.mxu0 0.0
    %1483 = vmatmul.mubr.f32.gmra.mxu0 %v1203
    %v1484 = vpop.f32.mrf.mxu0
    %v1485 = vadd.f32 %v1163, %v1484
    %v1486 = vpop.f32.mrf.mxu0
    %1487 = vmatprep.mubr.f32.mxu0 0.0
    %1488 = vmatmul.mubr.f32.gmra.mxu0 %v1206
    %v1489 = vpop.f32.mrf.mxu0
    %v1490 = vadd.f32 %v1163, %v1489
    %v1491 = vpop.f32.mrf.mxu0
    %1492 = vmatprep.mubr.f32.mxu0 0.0
    %1493 = vmatmul.mubr.f32.gmra.mxu0 %v1209
    %v1494 = vpop.f32.mrf.mxu0
    %v1495 = vadd.f32 %v1163, %v1494
    %v1496 = vpop.f32.mrf.mxu0
    %1497 = vmatprep.mubr.f32.mxu0 0.0
    %1498 = vmatmul.mubr.f32.gmra.mxu0 %v1212
    %v1499 = vpop.f32.mrf.mxu0
    %v1500 = vadd.f32 %v1163, %v1499
    %v1501 = vpop.f32.mrf.mxu0
    %1502 = vmatprep.mubr.f32.mxu0 0.0
    %1503 = vmatmul.mubr.f32.gmra.mxu0 %v1215
    %v1504 = vpop.f32.mrf.mxu0
    %v1505 = vadd.f32 %v1163, %v1504
    %v1506 = vpop.f32.mrf.mxu0
    %1507 = vmatprep.mubr.f32.mxu0 0.0
    %1508 = vmatmul.mubr.f32.gmra.mxu0 %v1218
    %v1509 = vpop.f32.mrf.mxu0
    %v1510 = vadd.f32 %v1163, %v1509
    %v1511 = vpop.f32.mrf.mxu0
    %1512 = vmatprep.mubr.f32.mxu0 0.0
    %1513 = vmatmul.mubr.f32.gmra.mxu0 %v1221
    %v1514 = vpop.f32.mrf.mxu0
    %v1515 = vadd.f32 %v1163, %v1514
    %v1516 = vpop.f32.mrf.mxu0
    %1517 = vmatprep.mubr.f32.mxu0 0.0
    %1518 = vmatmul.mubr.f32.gmra.mxu0 %v1224
    %v1519 = vpop.f32.mrf.mxu0
    %v1520 = vadd.f32 %v1163, %v1519
    %v1521 = vpop.f32.mrf.mxu0
    %1522 = vmatprep.mubr.f32.mxu0 0.0
    %1523 = vmatmul.mubr.f32.gmra.mxu0 %v1227
    %v1524 = vpop.f32.mrf.mxu0
    %v1525 = vadd.f32 %v1163, %v1524
    %v1526 = vpop.f32.mrf.mxu0
    %1527 = vmatprep.mubr.f32.mxu0 0.0
    %1528 = vmatmul.mubr.f32.gmra.mxu0 %v1230
    %v1529 = vpop.f32.mrf.mxu0
    %v1530 = vadd.f32 %v1163, %v1529
    %v1531 = vpop.f32.mrf.mxu0
    %1532 = vmatprep.mubr.f32.mxu0 0.0
    %1533 = vmatmul.mubr.f32.gmra.mxu0 %v1233
    %v1534 = vpop.f32.mrf.mxu0
    %v1535 = vadd.f32 %v1163, %v1534
    %v1536 = vpop.f32.mrf.mxu0
    %1537 = vmatprep.mubr.f32.mxu0 0.0
    %1538 = vmatmul.mubr.f32.gmra.mxu0 %v1236
    %v1539 = vpop.f32.mrf.mxu0
    %v1540 = vadd.f32 %v1163, %v1539
    %v1541 = vpop.f32.mrf.mxu0
    %1542 = vmatprep.mubr.f32.mxu0 0.0
    %1543 = vmatmul.mubr.f32.gmra.mxu0 %v1239
    %v1544 = vpop.f32.mrf.mxu0
    %v1545 = vadd.f32 %v1163, %v1544
    %v1546 = vpop.f32.mrf.mxu0
    %1547 = vmatprep.mubr.f32.mxu0 0.0
    %1548 = vmatmul.mubr.f32.gmra.mxu0 %v1242
    %v1549 = vpop.f32.mrf.mxu0
    %v1550 = vadd.f32 %v1163, %v1549
    %v1551 = vpop.f32.mrf.mxu0
    %1552 = vmatprep.mubr.f32.mxu0 0.0
    %1553 = vmatmul.mubr.f32.gmra.mxu0 %v1245
    %v1554 = vpop.f32.mrf.mxu0
    %v1555 = vadd.f32 %v1163, %v1554
    %v1556 = vpop.f32.mrf.mxu0
    %1557 = vmatprep.mubr.f32.mxu0 0.0
    %1558 = vmatmul.mubr.f32.gmra.mxu0 %v1248
    %v1559 = vpop.f32.mrf.mxu0
    %v1560 = vadd.f32 %v1163, %v1559
    %v1561 = vpop.f32.mrf.mxu0
    %1562 = vmatprep.mubr.f32.mxu0 0.0
    %1563 = vmatmul.mubr.f32.gmra.mxu0 %v1251
    %v1564 = vpop.f32.mrf.mxu0
    %v1565 = vadd.f32 %v1163, %v1564
    %v1566 = vpop.f32.mrf.mxu0
    %1567 = vmatprep.mubr.f32.mxu0 0.0
    %1568 = vmatmul.mubr.f32.gmra.mxu0 %v1254
    %v1569 = vpop.f32.mrf.mxu0
    %v1570 = vadd.f32 %v1163, %v1569
    %v1571 = vpop.f32.mrf.mxu0
    %1572 = vmatprep.mubr.f32.mxu0 0.0
    %1573 = vmatmul.mubr.f32.gmra.mxu0 %v1257
    %v1574 = vpop.f32.mrf.mxu0
    %v1575 = vadd.f32 %v1163, %v1574
    %v1576 = vpop.f32.mrf.mxu0
    %1577 = vmatprep.mubr.f32.mxu0 0.0
    %1578 = vmatmul.mubr.f32.gmra.mxu0 %v1260
    %v1579 = vpop.f32.mrf.mxu0
    %v1580 = vadd.f32 %v1163, %v1579
    %v1581 = vpop.f32.mrf.mxu0
    %1582 = vmatprep.mubr.f32.mxu0 0.0
    %1583 = vmatmul.mubr.f32.gmra.mxu0 %v1263
    %v1584 = vpop.f32.mrf.mxu0
    %v1585 = vadd.f32 %v1163, %v1584
    %v1586 = vpop.f32.mrf.mxu0
    %1587 = vmatprep.mubr.f32.mxu0 0.0
    %1588 = vmatmul.mubr.f32.gmra.mxu0 %v1266
    %v1589 = vpop.f32.mrf.mxu0
    %v1590 = vadd.f32 %v1163, %v1589
    %v1591 = vpop.f32.mrf.mxu0
    %1592 = vmatprep.mubr.f32.mxu0 0.0
    %1593 = vmatmul.mubr.f32.gmra.mxu0 %v1269
    %v1594 = vpop.f32.mrf.mxu0
    %v1595 = vadd.f32 %v1163, %v1594
    %v1596 = vpop.f32.mrf.mxu0
    %1597 = vmatprep.mubr.f32.mxu0 0.0
    %1598 = vmatmul.mubr.f32.gmra.mxu0 %v1272
    %v1599 = vpop.f32.mrf.mxu0
    %v1600 = vadd.f32 %v1163, %v1599
    %v1601 = vpop.f32.mrf.mxu0
    %1602 = vmatprep.mubr.f32.mxu0 0.0
    %1603 = vmatmul.mubr.f32.gmra.mxu0 %v1275
    %v1604 = vpop.f32.mrf.mxu0
    %v1605 = vadd.f32 %v1163, %v1604
    %v1606 = vpop.f32.mrf.mxu0
    %1607 = vmatprep.mubr.f32.mxu0 0.0
    %1608 = vmatmul.mubr.f32.gmra.mxu0 %v1278
    %v1609 = vpop.f32.mrf.mxu0
    %v1610 = vadd.f32 %v1163, %v1609
    %v1611 = vpop.f32.mrf.mxu0
    %1612 = vmatprep.mubr.f32.mxu0 0.0
    %1613 = vmatmul.mubr.f32.gmra.mxu0 %v1281
    %v1614 = vpop.f32.mrf.mxu0
    %v1615 = vadd.f32 %v1163, %v1614
    %v1616 = vpop.f32.mrf.mxu0
    %1617 = vmatprep.mubr.f32.mxu0 0.0
    %1618 = vmatmul.mubr.f32.gmra.mxu0 %v1284
    %v1619 = vpop.f32.mrf.mxu0
    %v1620 = vadd.f32 %v1163, %v1619
    %v1621 = vpop.f32.mrf.mxu0
    %1622 = vmatprep.mubr.f32.mxu0 0.0
    %1623 = vmatmul.mubr.f32.gmra.mxu0 %v1287
    %v1624 = vpop.f32.mrf.mxu0
    %v1625 = vadd.f32 %v1163, %v1624
    %v1626 = vpop.f32.mrf.mxu0
    %1627 = vmatprep.mubr.f32.mxu0 0.0
    %1628 = vmatmul.mubr.f32.gmra.mxu0 %v1290
    %v1629 = vpop.f32.mrf.mxu0
    %v1630 = vadd.f32 %v1163, %v1629
    %v1631 = vpop.f32.mrf.mxu0
    %1632 = vmatprep.mubr.f32.mxu0 0.0
    %1633 = vmatmul.mubr.f32.gmra.mxu0 %v1293
    %v1634 = vpop.f32.mrf.mxu0
    %v1635 = vadd.f32 %v1163, %v1634
    %v1636 = vpop.f32.mrf.mxu0
    %1637 = vmatprep.mubr.f32.mxu0 0.0
    %1638 = vmatmul.mubr.f32.gmra.mxu0 %v1296
    %v1639 = vpop.f32.mrf.mxu0
    %v1640 = vadd.f32 %v1163, %v1639
    %v1641 = vpop.f32.mrf.mxu0
    %1642 = vmatprep.mubr.f32.mxu0 0.0
    %1643 = vmatmul.mubr.f32.gmra.mxu0 %v1299
    %v1644 = vpop.f32.mrf.mxu0
    %v1645 = vadd.f32 %v1163, %v1644
    %v1646 = vpop.f32.mrf.mxu0
    %1647 = vmatprep.mubr.f32.mxu0 0.0
    %1648 = vmatmul.mubr.f32.gmra.mxu0 %v1302
    %v1649 = vpop.f32.mrf.mxu0
    %v1650 = vadd.f32 %v1163, %v1649
    %v1651 = vpop.f32.mrf.mxu0
    %1652 = vmatprep.mubr.f32.mxu0 0.0
    %1653 = vmatmul.mubr.f32.gmra.mxu0 %v1305
    %v1654 = vpop.f32.mrf.mxu0
    %v1655 = vadd.f32 %v1163, %v1654
    %v1656 = vpop.f32.mrf.mxu0
    %1657 = vmatprep.mubr.f32.mxu0 0.0
    %1658 = vmatmul.mubr.f32.gmra.mxu0 %v1308
    %v1659 = vpop.f32.mrf.mxu0
    %v1660 = vadd.f32 %v1163, %v1659
    %v1661 = vpop.f32.mrf.mxu0
    %1662 = vmatprep.mubr.f32.mxu0 0.0
    %1663 = vmatmul.mubr.f32.gmra.mxu0 %v1311
    %v1664 = vpop.f32.mrf.mxu0
    %v1665 = vadd.f32 %v1163, %v1664
    %v1666 = vpop.f32.mrf.mxu0
    %1667 = vmatprep.mubr.f32.mxu0 0.0
    %1668 = vmatmul.mubr.f32.gmra.mxu0 %v1314
    %v1669 = vpop.f32.mrf.mxu0
    %v1670 = vadd.f32 %v1163, %v1669
    %v1671 = vpop.f32.mrf.mxu0
    %1672 = vmatprep.mubr.f32.mxu0 0.0
    %1673 = vmatmul.mubr.f32.gmra.mxu0 %v1317
    %v1674 = vpop.f32.mrf.mxu0
    %v1675 = vadd.f32 %v1163, %v1674
    %v1676 = vpop.f32.mrf.mxu0
    %1677 = vmatprep.mubr.f32.mxu0 0.0
    %1678 = vmatmul.mubr.f32.gmra.mxu0 %v1320
    %v1679 = vpop.f32.mrf.mxu0
    %v1680 = vadd.f32 %v1163, %v1679
    %v1681 = vpop.f32.mrf.mxu0
    %1682 = vmatprep.mubr.f32.mxu0 0.0
    %1683 = vmatmul.mubr.f32.gmra.mxu0 %v1323
    %v1684 = vpop.f32.mrf.mxu0
    %v1685 = vadd.f32 %v1163, %v1684
    %v1686 = vpop.f32.mrf.mxu0
    %1687 = vmatprep.mubr.f32.mxu0 0.0
    %1688 = vmatmul.mubr.f32.gmra.mxu0 %v1326
    %v1689 = vpop.f32.mrf.mxu0
    %v1690 = vadd.f32 %v1163, %v1689
    %v1691 = vpop.f32.mrf.mxu0
    %1692 = vmatprep.mubr.f32.mxu0 0.0
    %1693 = vmatmul.mubr.f32.gmra.mxu0 %v1329
    %v1694 = vpop.f32.mrf.mxu0
    %v1695 = vadd.f32 %v1163, %v1694
    %v1696 = vpop.f32.mrf.mxu0
    %1697 = vmatprep.mubr.f32.mxu0 0.0
    %1698 = vmatmul.mubr.f32.gmra.mxu0 %v1332
    %v1699 = vpop.f32.mrf.mxu0
    %v1700 = vadd.f32 %v1163, %v1699
    %v1701 = vpop.f32.mrf.mxu0
    %1702 = vmatprep.mubr.f32.mxu0 0.0
    %1703 = vmatmul.mubr.f32.gmra.mxu0 %v1335
    %v1704 = vpop.f32.mrf.mxu0
    %v1705 = vadd.f32 %v1163, %v1704
    %v1706 = vpop.f32.mrf.mxu0
    %1707 = vmatprep.mubr.f32.mxu0 0.0
    %1708 = vmatmul.mubr.f32.gmra.mxu0 %v1338
    %v1709 = vpop.f32.mrf.mxu0
    %v1710 = vadd.f32 %v1163, %v1709
    %v1711 = vpop.f32.mrf.mxu0
    %1712 = vmatprep.mubr.f32.mxu0 0.0
    %1713 = vmatmul.mubr.f32.gmra.mxu0 %v1341
    %v1714 = vpop.f32.mrf.mxu0
    %v1715 = vadd.f32 %v1163, %v1714
    %v1716 = vpop.f32.mrf.mxu0
    %1717 = vmatprep.mubr.f32.mxu0 0.0
    %1718 = vmatmul.mubr.f32.gmra.mxu0 %v1344
    %v1719 = vpop.f32.mrf.mxu0
    %v1720 = vadd.f32 %v1163, %v1719
    %v1721 = vpop.f32.mrf.mxu0
    %1722 = vmatprep.mubr.f32.mxu0 0.0
    %1723 = vmatmul.mubr.f32.gmra.mxu0 %v1347
    %v1724 = vpop.f32.mrf.mxu0
    %v1725 = vadd.f32 %v1163, %v1724
    %v1726 = vpop.f32.mrf.mxu0
    %1727 = vmatprep.mubr.f32.mxu0 0.0
    %1728 = vmatmul.mubr.f32.gmra.mxu0 %v1350
    %v1729 = vpop.f32.mrf.mxu0
    %v1730 = vadd.f32 %v1163, %v1729
    %v1731 = vpop.f32.mrf.mxu0
    %1732 = vmatprep.mubr.f32.mxu0 0.0
    %1733 = vmatmul.mubr.f32.gmra.mxu0 %v1353
    %v1734 = vpop.f32.mrf.mxu0
    %v1735 = vadd.f32 %v1163, %v1734
    %v1736 = vpop.f32.mrf.mxu0
    %1737 = vmatprep.mubr.f32.mxu0 0.0
    %1738 = vmatmul.mubr.f32.gmra.mxu0 %v1356
    %v1739 = vpop.f32.mrf.mxu0
    %v1740 = vadd.f32 %v1163, %v1739
    %v1741 = vpop.f32.mrf.mxu0
    %1742 = vdwg.mxu0
    %v1743 = vxor.u32 %v1425, 2147483648
    %v1744 = vxor.u32 %v1430, 2147483648
    %v1745 = vxor.u32 %v1435, 2147483648
    %v1746 = vxor.u32 %v1440, 2147483648
    %v1747 = vxor.u32 %v1445, 2147483648
    %v1748 = vxor.u32 %v1450, 2147483648
    %v1749 = vxor.u32 %v1455, 2147483648
    %v1750 = vxor.u32 %v1460, 2147483648
    %v1751 = vxor.u32 %v1465, 2147483648
    %v1752 = vxor.u32 %v1470, 2147483648
    %v1753 = vxor.u32 %v1475, 2147483648
    %v1754 = vxor.u32 %v1480, 2147483648
    %v1755 = vxor.u32 %v1485, 2147483648
    %v1756 = vxor.u32 %v1490, 2147483648
    %v1757 = vxor.u32 %v1495, 2147483648
    %v1758 = vxor.u32 %v1500, 2147483648
    %v1759 = vxor.u32 %v1505, 2147483648
    %v1760 = vxor.u32 %v1510, 2147483648
    %v1761 = vxor.u32 %v1515, 2147483648
    %v1762 = vxor.u32 %v1520, 2147483648
    %v1763 = vxor.u32 %v1525, 2147483648
    %v1764 = vxor.u32 %v1530, 2147483648
    %v1765 = vxor.u32 %v1535, 2147483648
    %v1766 = vxor.u32 %v1540, 2147483648
    %v1767 = vxor.u32 %v1545, 2147483648
    %v1768 = vxor.u32 %v1550, 2147483648
    %v1769 = vxor.u32 %v1555, 2147483648
    %v1770 = vxor.u32 %v1560, 2147483648
    %v1771 = vxor.u32 %v1565, 2147483648
    %v1772 = vxor.u32 %v1570, 2147483648
    %v1773 = vxor.u32 %v1575, 2147483648
    %v1774 = vxor.u32 %v1580, 2147483648
    %v1775 = vxor.u32 %v1585, 2147483648
    %v1776 = vxor.u32 %v1590, 2147483648
    %v1777 = vxor.u32 %v1595, 2147483648
    %v1778 = vxor.u32 %v1600, 2147483648
    %v1779 = vxor.u32 %v1605, 2147483648
    %v1780 = vxor.u32 %v1610, 2147483648
    %v1781 = vxor.u32 %v1615, 2147483648
    %v1782 = vxor.u32 %v1620, 2147483648
    %v1783 = vxor.u32 %v1625, 2147483648
    %v1784 = vxor.u32 %v1630, 2147483648
    %v1785 = vxor.u32 %v1635, 2147483648
    %v1786 = vxor.u32 %v1640, 2147483648
    %v1787 = vxor.u32 %v1645, 2147483648
    %v1788 = vxor.u32 %v1650, 2147483648
    %v1789 = vxor.u32 %v1655, 2147483648
    %v1790 = vxor.u32 %v1660, 2147483648
    %v1791 = vxor.u32 %v1665, 2147483648
    %v1792 = vxor.u32 %v1670, 2147483648
    %v1793 = vxor.u32 %v1675, 2147483648
    %v1794 = vxor.u32 %v1680, 2147483648
    %v1795 = vxor.u32 %v1685, 2147483648
    %v1796 = vxor.u32 %v1690, 2147483648
    %v1797 = vxor.u32 %v1695, 2147483648
    %v1798 = vxor.u32 %v1700, 2147483648
    %v1799 = vxor.u32 %v1705, 2147483648
    %v1800 = vxor.u32 %v1710, 2147483648
    %v1801 = vxor.u32 %v1715, 2147483648
    %v1802 = vxor.u32 %v1720, 2147483648
    %v1803 = vxor.u32 %v1725, 2147483648
    %v1804 = vxor.u32 %v1730, 2147483648
    %v1805 = vxor.u32 %v1735, 2147483648
    %v1806 = vxor.u32 %v1740, 2147483648
    %v1807 = vmul.f32 %v1743, 1.442695
    %v1808 = vpow.pop %v1807
    %v1809 = vmul.f32 %v1744, 1.442695
    %v1810 = vpow.pop %v1809
    %v1811 = vmul.f32 %v1745, 1.442695
    %v1812 = vpow.pop %v1811
    %v1813 = vmul.f32 %v1746, 1.442695
    %v1814 = vpow.pop %v1813
    %v1815 = vmul.f32 %v1747, 1.442695
    %v1816 = vpow.pop %v1815
    %v1817 = vmul.f32 %v1748, 1.442695
    %v1818 = vpow.pop %v1817
    %v1819 = vmul.f32 %v1749, 1.442695
    %v1820 = vpow.pop %v1819
    %v1821 = vmul.f32 %v1750, 1.442695
    %v1822 = vpow.pop %v1821
    %v1823 = vmul.f32 %v1751, 1.442695
    %v1824 = vpow.pop %v1823
    %v1825 = vmul.f32 %v1752, 1.442695
    %v1826 = vpow.pop %v1825
    %v1827 = vmul.f32 %v1753, 1.442695
    %v1828 = vpow.pop %v1827
    %v1829 = vmul.f32 %v1754, 1.442695
    %v1830 = vpow.pop %v1829
    %v1831 = vmul.f32 %v1755, 1.442695
    %v1832 = vpow.pop %v1831
    %v1833 = vmul.f32 %v1756, 1.442695
    %v1834 = vpow.pop %v1833
    %v1835 = vmul.f32 %v1757, 1.442695
    %v1836 = vpow.pop %v1835
    %v1837 = vmul.f32 %v1758, 1.442695
    %v1838 = vpow.pop %v1837
    %v1839 = vmul.f32 %v1759, 1.442695
    %v1840 = vpow.pop %v1839
    %v1841 = vmul.f32 %v1760, 1.442695
    %v1842 = vpow.pop %v1841
    %v1843 = vmul.f32 %v1761, 1.442695
    %v1844 = vpow.pop %v1843
    %v1845 = vmul.f32 %v1762, 1.442695
    %v1846 = vpow.pop %v1845
    %v1847 = vmul.f32 %v1763, 1.442695
    %v1848 = vpow.pop %v1847
    %v1849 = vmul.f32 %v1764, 1.442695
    %v1850 = vpow.pop %v1849
    %v1851 = vmul.f32 %v1765, 1.442695
    %v1852 = vpow.pop %v1851
    %v1853 = vmul.f32 %v1766, 1.442695
    %v1854 = vpow.pop %v1853
    %v1855 = vmul.f32 %v1767, 1.442695
    %v1856 = vpow.pop %v1855
    %v1857 = vmul.f32 %v1768, 1.442695
    %v1858 = vpow.pop %v1857
    %v1859 = vmul.f32 %v1769, 1.442695
    %v1860 = vpow.pop %v1859
    %v1861 = vmul.f32 %v1770, 1.442695
    %v1862 = vpow.pop %v1861
    %v1863 = vmul.f32 %v1771, 1.442695
    %v1864 = vpow.pop %v1863
    %v1865 = vmul.f32 %v1772, 1.442695
    %v1866 = vpow.pop %v1865
    %v1867 = vmul.f32 %v1773, 1.442695
    %v1868 = vpow.pop %v1867
    %v1869 = vmul.f32 %v1774, 1.442695
    %v1870 = vpow.pop %v1869
    %v1871 = vmul.f32 %v1775, 1.442695
    %v1872 = vpow.pop %v1871
    %v1873 = vmul.f32 %v1776, 1.442695
    %v1874 = vpow.pop %v1873
    %v1875 = vmul.f32 %v1777, 1.442695
    %v1876 = vpow.pop %v1875
    %v1877 = vmul.f32 %v1778, 1.442695
    %v1878 = vpow.pop %v1877
    %v1879 = vmul.f32 %v1779, 1.442695
    %v1880 = vpow.pop %v1879
    %v1881 = vmul.f32 %v1780, 1.442695
    %v1882 = vpow.pop %v1881
    %v1883 = vmul.f32 %v1781, 1.442695
    %v1884 = vpow.pop %v1883
    %v1885 = vmul.f32 %v1782, 1.442695
    %v1886 = vpow.pop %v1885
    %v1887 = vmul.f32 %v1783, 1.442695
    %v1888 = vpow.pop %v1887
    %v1889 = vmul.f32 %v1784, 1.442695
    %v1890 = vpow.pop %v1889
    %v1891 = vmul.f32 %v1785, 1.442695
    %v1892 = vpow.pop %v1891
    %v1893 = vmul.f32 %v1786, 1.442695
    %v1894 = vpow.pop %v1893
    %v1895 = vmul.f32 %v1787, 1.442695
    %v1896 = vpow.pop %v1895
    %v1897 = vmul.f32 %v1788, 1.442695
    %v1898 = vpow.pop %v1897
    %v1899 = vmul.f32 %v1789, 1.442695
    %v1900 = vpow.pop %v1899
    %v1901 = vmul.f32 %v1790, 1.442695
    %v1902 = vpow.pop %v1901
    %v1903 = vmul.f32 %v1791, 1.442695
    %v1904 = vpow.pop %v1903
    %v1905 = vmul.f32 %v1792, 1.442695
    %v1906 = vpow.pop %v1905
    %v1907 = vmul.f32 %v1793, 1.442695
    %v1908 = vpow.pop %v1907
    %v1909 = vmul.f32 %v1794, 1.442695
    %v1910 = vpow.pop %v1909
    %v1911 = vmul.f32 %v1795, 1.442695
    %v1912 = vpow.pop %v1911
    %v1913 = vmul.f32 %v1796, 1.442695
    %v1914 = vpow.pop %v1913
    %v1915 = vmul.f32 %v1797, 1.442695
    %v1916 = vpow.pop %v1915
    %v1917 = vmul.f32 %v1798, 1.442695
    %v1918 = vpow.pop %v1917
    %v1919 = vmul.f32 %v1799, 1.442695
    %v1920 = vpow.pop %v1919
    %v1921 = vmul.f32 %v1800, 1.442695
    %v1922 = vpow.pop %v1921
    %v1923 = vmul.f32 %v1801, 1.442695
    %v1924 = vpow.pop %v1923
    %v1925 = vmul.f32 %v1802, 1.442695
    %v1926 = vpow.pop %v1925
    %v1927 = vmul.f32 %v1803, 1.442695
    %v1928 = vpow.pop %v1927
    %v1929 = vmul.f32 %v1804, 1.442695
    %v1930 = vpow.pop %v1929
    %v1931 = vmul.f32 %v1805, 1.442695
    %v1932 = vpow.pop %v1931
    %v1933 = vmul.f32 %v1806, 1.442695
    %v1934 = vpow.pop %v1933
    %v1935 = vadd.f32 %v1808, 1.0
    %v1936 = vadd.f32 %v1810, 1.0
    %v1937 = vadd.f32 %v1812, 1.0
    %v1938 = vadd.f32 %v1814, 1.0
    %v1939 = vadd.f32 %v1816, 1.0
    %v1940 = vadd.f32 %v1818, 1.0
    %v1941 = vadd.f32 %v1820, 1.0
    %v1942 = vadd.f32 %v1822, 1.0
    %v1943 = vadd.f32 %v1824, 1.0
    %v1944 = vadd.f32 %v1826, 1.0
    %v1945 = vadd.f32 %v1828, 1.0
    %v1946 = vadd.f32 %v1830, 1.0
    %v1947 = vadd.f32 %v1832, 1.0
    %v1948 = vadd.f32 %v1834, 1.0
    %v1949 = vadd.f32 %v1836, 1.0
    %v1950 = vadd.f32 %v1838, 1.0
    %v1951 = vadd.f32 %v1840, 1.0
    %v1952 = vadd.f32 %v1842, 1.0
    %v1953 = vadd.f32 %v1844, 1.0
    %v1954 = vadd.f32 %v1846, 1.0
    %v1955 = vadd.f32 %v1848, 1.0
    %v1956 = vadd.f32 %v1850, 1.0
    %v1957 = vadd.f32 %v1852, 1.0
    %v1958 = vadd.f32 %v1854, 1.0
    %v1959 = vadd.f32 %v1856, 1.0
    %v1960 = vadd.f32 %v1858, 1.0
    %v1961 = vadd.f32 %v1860, 1.0
    %v1962 = vadd.f32 %v1862, 1.0
    %v1963 = vadd.f32 %v1864, 1.0
    %v1964 = vadd.f32 %v1866, 1.0
    %v1965 = vadd.f32 %v1868, 1.0
    %v1966 = vadd.f32 %v1870, 1.0
    %v1967 = vadd.f32 %v1872, 1.0
    %v1968 = vadd.f32 %v1874, 1.0
    %v1969 = vadd.f32 %v1876, 1.0
    %v1970 = vadd.f32 %v1878, 1.0
    %v1971 = vadd.f32 %v1880, 1.0
    %v1972 = vadd.f32 %v1882, 1.0
    %v1973 = vadd.f32 %v1884, 1.0
    %v1974 = vadd.f32 %v1886, 1.0
    %v1975 = vadd.f32 %v1888, 1.0
    %v1976 = vadd.f32 %v1890, 1.0
    %v1977 = vadd.f32 %v1892, 1.0
    %v1978 = vadd.f32 %v1894, 1.0
    %v1979 = vadd.f32 %v1896, 1.0
    %v1980 = vadd.f32 %v1898, 1.0
    %v1981 = vadd.f32 %v1900, 1.0
    %v1982 = vadd.f32 %v1902, 1.0
    %v1983 = vadd.f32 %v1904, 1.0
    %v1984 = vadd.f32 %v1906, 1.0
    %v1985 = vadd.f32 %v1908, 1.0
    %v1986 = vadd.f32 %v1910, 1.0
    %v1987 = vadd.f32 %v1912, 1.0
    %v1988 = vadd.f32 %v1914, 1.0
    %v1989 = vadd.f32 %v1916, 1.0
    %v1990 = vadd.f32 %v1918, 1.0
    %v1991 = vadd.f32 %v1920, 1.0
    %v1992 = vadd.f32 %v1922, 1.0
    %v1993 = vadd.f32 %v1924, 1.0
    %v1994 = vadd.f32 %v1926, 1.0
    %v1995 = vadd.f32 %v1928, 1.0
    %v1996 = vadd.f32 %v1930, 1.0
    %v1997 = vadd.f32 %v1932, 1.0
    %v1998 = vadd.f32 %v1934, 1.0
    %v1999 = vrcp.pop %v1935
    %v2000 = vmul.f32 1.0, %v1999
    %v2001 = vrcp.pop %v1936
    %v2002 = vmul.f32 1.0, %v2001
    %v2003 = vrcp.pop %v1937
    %v2004 = vmul.f32 1.0, %v2003
    %v2005 = vrcp.pop %v1938
    %v2006 = vmul.f32 1.0, %v2005
    %v2007 = vrcp.pop %v1939
    %v2008 = vmul.f32 1.0, %v2007
    %v2009 = vrcp.pop %v1940
    %v2010 = vmul.f32 1.0, %v2009
    %v2011 = vrcp.pop %v1941
    %v2012 = vmul.f32 1.0, %v2011
    %v2013 = vrcp.pop %v1942
    %v2014 = vmul.f32 1.0, %v2013
    %v2015 = vrcp.pop %v1943
    %v2016 = vmul.f32 1.0, %v2015
    %v2017 = vrcp.pop %v1944
    %v2018 = vmul.f32 1.0, %v2017
    %v2019 = vrcp.pop %v1945
    %v2020 = vmul.f32 1.0, %v2019
    %v2021 = vrcp.pop %v1946
    %v2022 = vmul.f32 1.0, %v2021
    %v2023 = vrcp.pop %v1947
    %v2024 = vmul.f32 1.0, %v2023
    %v2025 = vrcp.pop %v1948
    %v2026 = vmul.f32 1.0, %v2025
    %v2027 = vrcp.pop %v1949
    %v2028 = vmul.f32 1.0, %v2027
    %v2029 = vrcp.pop %v1950
    %v2030 = vmul.f32 1.0, %v2029
    %v2031 = vrcp.pop %v1951
    %v2032 = vmul.f32 1.0, %v2031
    %v2033 = vrcp.pop %v1952
    %v2034 = vmul.f32 1.0, %v2033
    %v2035 = vrcp.pop %v1953
    %v2036 = vmul.f32 1.0, %v2035
    %v2037 = vrcp.pop %v1954
    %v2038 = vmul.f32 1.0, %v2037
    %v2039 = vrcp.pop %v1955
    %v2040 = vmul.f32 1.0, %v2039
    %v2041 = vrcp.pop %v1956
    %v2042 = vmul.f32 1.0, %v2041
    %v2043 = vrcp.pop %v1957
    %v2044 = vmul.f32 1.0, %v2043
    %v2045 = vrcp.pop %v1958
    %v2046 = vmul.f32 1.0, %v2045
    %v2047 = vrcp.pop %v1959
    %v2048 = vmul.f32 1.0, %v2047
    %v2049 = vrcp.pop %v1960
    %v2050 = vmul.f32 1.0, %v2049
    %v2051 = vrcp.pop %v1961
    %v2052 = vmul.f32 1.0, %v2051
    %v2053 = vrcp.pop %v1962
    %v2054 = vmul.f32 1.0, %v2053
    %v2055 = vrcp.pop %v1963
    %v2056 = vmul.f32 1.0, %v2055
    %v2057 = vrcp.pop %v1964
    %v2058 = vmul.f32 1.0, %v2057
    %v2059 = vrcp.pop %v1965
    %v2060 = vmul.f32 1.0, %v2059
    %v2061 = vrcp.pop %v1966
    %v2062 = vmul.f32 1.0, %v2061
    %v2063 = vrcp.pop %v1967
    %v2064 = vmul.f32 1.0, %v2063
    %v2065 = vrcp.pop %v1968
    %v2066 = vmul.f32 1.0, %v2065
    %v2067 = vrcp.pop %v1969
    %v2068 = vmul.f32 1.0, %v2067
    %v2069 = vrcp.pop %v1970
    %v2070 = vmul.f32 1.0, %v2069
    %v2071 = vrcp.pop %v1971
    %v2072 = vmul.f32 1.0, %v2071
    %v2073 = vrcp.pop %v1972
    %v2074 = vmul.f32 1.0, %v2073
    %v2075 = vrcp.pop %v1973
    %v2076 = vmul.f32 1.0, %v2075
    %v2077 = vrcp.pop %v1974
    %v2078 = vmul.f32 1.0, %v2077
    %v2079 = vrcp.pop %v1975
    %v2080 = vmul.f32 1.0, %v2079
    %v2081 = vrcp.pop %v1976
    %v2082 = vmul.f32 1.0, %v2081
    %v2083 = vrcp.pop %v1977
    %v2084 = vmul.f32 1.0, %v2083
    %v2085 = vrcp.pop %v1978
    %v2086 = vmul.f32 1.0, %v2085
    %v2087 = vrcp.pop %v1979
    %v2088 = vmul.f32 1.0, %v2087
    %v2089 = vrcp.pop %v1980
    %v2090 = vmul.f32 1.0, %v2089
    %v2091 = vrcp.pop %v1981
    %v2092 = vmul.f32 1.0, %v2091
    %v2093 = vrcp.pop %v1982
    %v2094 = vmul.f32 1.0, %v2093
    %v2095 = vrcp.pop %v1983
    %v2096 = vmul.f32 1.0, %v2095
    %v2097 = vrcp.pop %v1984
    %v2098 = vmul.f32 1.0, %v2097
    %v2099 = vrcp.pop %v1985
    %v2100 = vmul.f32 1.0, %v2099
    %v2101 = vrcp.pop %v1986
    %v2102 = vmul.f32 1.0, %v2101
    %v2103 = vrcp.pop %v1987
    %v2104 = vmul.f32 1.0, %v2103
    %v2105 = vrcp.pop %v1988
    %v2106 = vmul.f32 1.0, %v2105
    %v2107 = vrcp.pop %v1989
    %v2108 = vmul.f32 1.0, %v2107
    %v2109 = vrcp.pop %v1990
    %v2110 = vmul.f32 1.0, %v2109
    %v2111 = vrcp.pop %v1991
    %v2112 = vmul.f32 1.0, %v2111
    %v2113 = vrcp.pop %v1992
    %v2114 = vmul.f32 1.0, %v2113
    %v2115 = vrcp.pop %v1993
    %v2116 = vmul.f32 1.0, %v2115
    %v2117 = vrcp.pop %v1994
    %v2118 = vmul.f32 1.0, %v2117
    %v2119 = vrcp.pop %v1995
    %v2120 = vmul.f32 1.0, %v2119
    %v2121 = vrcp.pop %v1996
    %v2122 = vmul.f32 1.0, %v2121
    %v2123 = vrcp.pop %v1997
    %v2124 = vmul.f32 1.0, %v2123
    %v2125 = vrcp.pop %v1998
    %v2126 = vmul.f32 1.0, %v2125
    %v2127 = vmul.f32 %v1425, %v2000
    %v2128 = vmul.f32 %v1430, %v2002
    %v2129 = vmul.f32 %v1435, %v2004
    %v2130 = vmul.f32 %v1440, %v2006
    %v2131 = vmul.f32 %v1445, %v2008
    %v2132 = vmul.f32 %v1450, %v2010
    %v2133 = vmul.f32 %v1455, %v2012
    %v2134 = vmul.f32 %v1460, %v2014
    %v2135 = vmul.f32 %v1465, %v2016
    %v2136 = vmul.f32 %v1470, %v2018
    %v2137 = vmul.f32 %v1475, %v2020
    %v2138 = vmul.f32 %v1480, %v2022
    %v2139 = vmul.f32 %v1485, %v2024
    %v2140 = vmul.f32 %v1490, %v2026
    %v2141 = vmul.f32 %v1495, %v2028
    %v2142 = vmul.f32 %v1500, %v2030
    %v2143 = vmul.f32 %v1505, %v2032
    %v2144 = vmul.f32 %v1510, %v2034
    %v2145 = vmul.f32 %v1515, %v2036
    %v2146 = vmul.f32 %v1520, %v2038
    %v2147 = vmul.f32 %v1525, %v2040
    %v2148 = vmul.f32 %v1530, %v2042
    %v2149 = vmul.f32 %v1535, %v2044
    %v2150 = vmul.f32 %v1540, %v2046
    %v2151 = vmul.f32 %v1545, %v2048
    %v2152 = vmul.f32 %v1550, %v2050
    %v2153 = vmul.f32 %v1555, %v2052
    %v2154 = vmul.f32 %v1560, %v2054
    %v2155 = vmul.f32 %v1565, %v2056
    %v2156 = vmul.f32 %v1570, %v2058
    %v2157 = vmul.f32 %v1575, %v2060
    %v2158 = vmul.f32 %v1580, %v2062
    %v2159 = vmul.f32 %v1585, %v2064
    %v2160 = vmul.f32 %v1590, %v2066
    %v2161 = vmul.f32 %v1595, %v2068
    %v2162 = vmul.f32 %v1600, %v2070
    %v2163 = vmul.f32 %v1605, %v2072
    %v2164 = vmul.f32 %v1610, %v2074
    %v2165 = vmul.f32 %v1615, %v2076
    %v2166 = vmul.f32 %v1620, %v2078
    %v2167 = vmul.f32 %v1625, %v2080
    %v2168 = vmul.f32 %v1630, %v2082
    %v2169 = vmul.f32 %v1635, %v2084
    %v2170 = vmul.f32 %v1640, %v2086
    %v2171 = vmul.f32 %v1645, %v2088
    %v2172 = vmul.f32 %v1650, %v2090
    %v2173 = vmul.f32 %v1655, %v2092
    %v2174 = vmul.f32 %v1660, %v2094
    %v2175 = vmul.f32 %v1665, %v2096
    %v2176 = vmul.f32 %v1670, %v2098
    %v2177 = vmul.f32 %v1675, %v2100
    %v2178 = vmul.f32 %v1680, %v2102
    %v2179 = vmul.f32 %v1685, %v2104
    %v2180 = vmul.f32 %v1690, %v2106
    %v2181 = vmul.f32 %v1695, %v2108
    %v2182 = vmul.f32 %v1700, %v2110
    %v2183 = vmul.f32 %v1705, %v2112
    %v2184 = vmul.f32 %v1710, %v2114
    %v2185 = vmul.f32 %v1715, %v2116
    %v2186 = vmul.f32 %v1720, %v2118
    %v2187 = vmul.f32 %v1725, %v2120
    %v2188 = vmul.f32 %v1730, %v2122
    %v2189 = vmul.f32 %v1735, %v2124
    %v2190 = vmul.f32 %v1740, %v2126
    %v2191 = vld [vmem:[%s3] sm:$0xff]
    %v2193 = vcombine.high %v2191, %v2191
    %v2195 = vunpack.c.l.s4 1983009808
    %v2196 = vunpack.c.0.s8 %v2195
    %v2197 = vlaneseq
    %v2198 = vshrl.u32 %v2197, 7
    %v2199 = vsub.s32 %v2196, %v2198
    %v2200 = vrot.slane %v2191, %v2199
    %v2202 = vunpack.c.l.s4 1983009808
    %v2203 = vunpack.c.0.s8 %v2202
    %v2204 = vlaneseq
    %v2205 = vshrl.u32 %v2204, 7
    %v2206 = vsub.s32 %v2203, %v2205
    %v2207 = vrot.slane %v2193, %v2206
    %v2208 = vcombine.high %v2200, %v2200
    %v2209 = vcombine.high %v2207, %v2207
    %2214 = vmatprep.subr.mxu0 0.0
    %2215 = vmatpush1.msra.mxu0 %v2142
    %2216 = vmatprep.subr.mxu0 0.0
    %2217 = vmatpush1.msra.mxu0 %v2141
    %2218 = vmatprep.subr.mxu0 0.0
    %2219 = vmatpush1.msra.mxu0 %v2140
    %2220 = vmatprep.subr.mxu0 0.0
    %2221 = vmatpush1.msra.mxu0 %v2139
    %2222 = vmatprep.subr.mxu0 0.0
    %2223 = vmatpush1.msra.mxu0 %v2138
    %2224 = vmatprep.subr.mxu0 0.0
    %2225 = vmatpush1.msra.mxu0 %v2137
    %2226 = vmatprep.subr.mxu0 0.0
    %2227 = vmatpush1.msra.mxu0 %v2136
    %2228 = vmatprep.subr.mxu0 0.0
    %2229 = vmatpush1.msra.mxu0 %v2135
    %2230 = vmatprep.subr.mxu0 0.0
    %2231 = vmatpush1.msra.mxu0 %v2134
    %2232 = vmatprep.subr.mxu0 0.0
    %2233 = vmatpush1.msra.mxu0 %v2133
    %2234 = vmatprep.subr.mxu0 0.0
    %2235 = vmatpush1.msra.mxu0 %v2132
    %2236 = vmatprep.subr.mxu0 0.0
    %2237 = vmatpush1.msra.mxu0 %v2131
    %2238 = vmatprep.subr.mxu0 0.0
    %2239 = vmatpush1.msra.mxu0 %v2130
    %2240 = vmatprep.subr.mxu0 0.0
    %2241 = vmatpush1.msra.mxu0 %v2129
    %2242 = vmatprep.subr.mxu0 0.0
    %2243 = vmatpush1.msra.mxu0 %v2128
    %2244 = vmatprep.subr.mxu0 0.0
    %2245 = vmatpush1.msra.mxu0 %v2127
    %2246 = vmatprep.subr.mxu0 0.0
    %2247 = vmatpush2.msra.mxu0 %v2158
    %2248 = vmatprep.subr.mxu0 0.0
    %2249 = vmatpush2.msra.mxu0 %v2157
    %2250 = vmatprep.subr.mxu0 0.0
    %2251 = vmatpush2.msra.mxu0 %v2156
    %2252 = vmatprep.subr.mxu0 0.0
    %2253 = vmatpush2.msra.mxu0 %v2155
    %2254 = vmatprep.subr.mxu0 0.0
    %2255 = vmatpush2.msra.mxu0 %v2154
    %2256 = vmatprep.subr.mxu0 0.0
    %2257 = vmatpush2.msra.mxu0 %v2153
    %2258 = vmatprep.subr.mxu0 0.0
    %2259 = vmatpush2.msra.mxu0 %v2152
    %2260 = vmatprep.subr.mxu0 0.0
    %2261 = vmatpush2.msra.mxu0 %v2151
    %2262 = vmatprep.subr.mxu0 0.0
    %2263 = vmatpush2.msra.mxu0 %v2150
    %2264 = vmatprep.subr.mxu0 0.0
    %2265 = vmatpush2.msra.mxu0 %v2149
    %2266 = vmatprep.subr.mxu0 0.0
    %2267 = vmatpush2.msra.mxu0 %v2148
    %2268 = vmatprep.subr.mxu0 0.0
    %2269 = vmatpush2.msra.mxu0 %v2147
    %2270 = vmatprep.subr.mxu0 0.0
    %2271 = vmatpush2.msra.mxu0 %v2146
    %2272 = vmatprep.subr.mxu0 0.0
    %2273 = vmatpush2.msra.mxu0 %v2145
    %2274 = vmatprep.subr.mxu0 0.0
    %2275 = vmatpush2.msra.mxu0 %v2144
    %2276 = vmatprep.subr.mxu0 0.0
    %2277 = vmatpush2.msra.mxu0 %v2143
    %2278 = vmatprep.mubr.f32.mxu0 %v2208
    %2279 = vmatmul.mubr.f32.gmra.mxu0 %v2200
    %v2280 = vpop.f32.mrf.mxu0
    %v2281 = vadd.f32 0.0, %v2280
    %v2282 = vpop.f32.mrf.mxu0
    %2283 = vdwg.mxu0
    %2284 = vmatprep.subr.mxu0 0.0
    %2285 = vmatpush1.msra.mxu0 %v2174
    %2286 = vmatprep.subr.mxu0 0.0
    %2287 = vmatpush1.msra.mxu0 %v2173
    %2288 = vmatprep.subr.mxu0 0.0
    %2289 = vmatpush1.msra.mxu0 %v2172
    %2290 = vmatprep.subr.mxu0 0.0
    %2291 = vmatpush1.msra.mxu0 %v2171
    %2292 = vmatprep.subr.mxu0 0.0
    %2293 = vmatpush1.msra.mxu0 %v2170
    %2294 = vmatprep.subr.mxu0 0.0
    %2295 = vmatpush1.msra.mxu0 %v2169
    %2296 = vmatprep.subr.mxu0 0.0
    %2297 = vmatpush1.msra.mxu0 %v2168
    %2298 = vmatprep.subr.mxu0 0.0
    %2299 = vmatpush1.msra.mxu0 %v2167
    %2300 = vmatprep.subr.mxu0 0.0
    %2301 = vmatpush1.msra.mxu0 %v2166
    %2302 = vmatprep.subr.mxu0 0.0
    %2303 = vmatpush1.msra.mxu0 %v2165
    %2304 = vmatprep.subr.mxu0 0.0
    %2305 = vmatpush1.msra.mxu0 %v2164
    %2306 = vmatprep.subr.mxu0 0.0
    %2307 = vmatpush1.msra.mxu0 %v2163
    %2308 = vmatprep.subr.mxu0 0.0
    %2309 = vmatpush1.msra.mxu0 %v2162
    %2310 = vmatprep.subr.mxu0 0.0
    %2311 = vmatpush1.msra.mxu0 %v2161
    %2312 = vmatprep.subr.mxu0 0.0
    %2313 = vmatpush1.msra.mxu0 %v2160
    %2314 = vmatprep.subr.mxu0 0.0
    %2315 = vmatpush1.msra.mxu0 %v2159
    %2316 = vmatprep.subr.mxu0 0.0
    %2317 = vmatpush2.msra.mxu0 %v2190
    %2318 = vmatprep.subr.mxu0 0.0
    %2319 = vmatpush2.msra.mxu0 %v2189
    %2320 = vmatprep.subr.mxu0 0.0
    %2321 = vmatpush2.msra.mxu0 %v2188
    %2322 = vmatprep.subr.mxu0 0.0
    %2323 = vmatpush2.msra.mxu0 %v2187
    %2324 = vmatprep.subr.mxu0 0.0
    %2325 = vmatpush2.msra.mxu0 %v2186
    %2326 = vmatprep.subr.mxu0 0.0
    %2327 = vmatpush2.msra.mxu0 %v2185
    %2328 = vmatprep.subr.mxu0 0.0
    %2329 = vmatpush2.msra.mxu0 %v2184
    %2330 = vmatprep.subr.mxu0 0.0
    %2331 = vmatpush2.msra.mxu0 %v2183
    %2332 = vmatprep.subr.mxu0 0.0
    %2333 = vmatpush2.msra.mxu0 %v2182
    %2334 = vmatprep.subr.mxu0 0.0
    %2335 = vmatpush2.msra.mxu0 %v2181
    %2336 = vmatprep.subr.mxu0 0.0
    %2337 = vmatpush2.msra.mxu0 %v2180
    %2338 = vmatprep.subr.mxu0 0.0
    %2339 = vmatpush2.msra.mxu0 %v2179
    %2340 = vmatprep.subr.mxu0 0.0
    %2341 = vmatpush2.msra.mxu0 %v2178
    %2342 = vmatprep.subr.mxu0 0.0
    %2343 = vmatpush2.msra.mxu0 %v2177
    %2344 = vmatprep.subr.mxu0 0.0
    %2345 = vmatpush2.msra.mxu0 %v2176
    %2346 = vmatprep.subr.mxu0 0.0
    %2347 = vmatpush2.msra.mxu0 %v2175
    %2348 = vmatprep.mubr.f32.mxu0 %v2209
    %2349 = vmatmul.mubr.f32.gmra.mxu0 %v2207
    %v2350 = vpop.f32.mrf.mxu0
    %v2351 = vadd.f32 %v2281, %v2350
    %v2352 = vpop.f32.mrf.mxu0
    %2353 = vdwg.mxu0
    %v2354 = vld [vmem:[%s1] sm:$0xf]
    %v2355 = vld [vmem:[%s8] sm:$0xff]
    %v2356 = vld [vmem:[%s8 + $0x8] sm:$0xff]
    %v2357 = vld [vmem:[%s8 + $0x10] sm:$0xff]
    %v2358 = vld [vmem:[%s8 + $0x18] sm:$0xff]
    %v2359 = vld [vmem:[%s8 + $0x20] sm:$0xff]
    %v2360 = vld [vmem:[%s8 + $0x28] sm:$0xff]
    %v2361 = vld [vmem:[%s8 + $0x30] sm:$0xff]
    %v2362 = vld [vmem:[%s8 + $0x38] sm:$0xff]
    %v2363 = vld [vmem:[%s8 + $0x40] sm:$0xff]
    %v2364 = vld [vmem:[%s8 + $0x48] sm:$0xff]
    %v2365 = vld [vmem:[%s8 + $0x50] sm:$0xff]
    %v2366 = vld [vmem:[%s8 + $0x58] sm:$0xff]
    %v2367 = vld [vmem:[%s8 + $0x60] sm:$0xff]
    %v2368 = vld [vmem:[%s8 + $0x68] sm:$0xff]
    %v2369 = vld [vmem:[%s8 + $0x70] sm:$0xff]
    %v2370 = vld [vmem:[%s8 + $0x78] sm:$0xff]
    %v2371 = vld [vmem:[%s8 + $0x80] sm:$0xff]
    %v2372 = vld [vmem:[%s8 + $0x88] sm:$0xff]
    %v2373 = vld [vmem:[%s8 + $0x90] sm:$0xff]
    %v2374 = vld [vmem:[%s8 + $0x98] sm:$0xff]
    %v2375 = vld [vmem:[%s8 + $0xa0] sm:$0xff]
    %v2376 = vld [vmem:[%s8 + $0xa8] sm:$0xff]
    %v2377 = vld [vmem:[%s8 + $0xb0] sm:$0xff]
    %v2378 = vld [vmem:[%s8 + $0xb8] sm:$0xff]
    %v2379 = vld [vmem:[%s8 + $0xc0] sm:$0xff]
    %v2380 = vld [vmem:[%s8 + $0xc8] sm:$0xff]
    %v2381 = vld [vmem:[%s8 + $0xd0] sm:$0xff]
    %v2382 = vld [vmem:[%s8 + $0xd8] sm:$0xff]
    %v2383 = vld [vmem:[%s8 + $0xe0] sm:$0xff]
    %v2384 = vld [vmem:[%s8 + $0xe8] sm:$0xff]
    %v2385 = vld [vmem:[%s8 + $0xf0] sm:$0xff]
    %v2386 = vld [vmem:[%s8 + $0xf8] sm:$0xff]
    %v2389 = vunpack.c.l.s4 1983009808
    %v2390 = vunpack.c.0.s8 %v2389
    %v2391 = vlaneseq
    %v2392 = vshrl.u32 %v2391, 7
    %v2393 = vsub.s32 %v2390, %v2392
    %v2394 = vrot.slane %v2354, %v2393
    %v2395 = vcombine.high %v2394, %v2394
    %2398 = vmatprep.subr.mxu0 0.0
    %2399 = vmatpush1.msra.mxu0 %v2370
    %2400 = vmatprep.subr.mxu0 0.0
    %2401 = vmatpush1.msra.mxu0 %v2369
    %2402 = vmatprep.subr.mxu0 0.0
    %2403 = vmatpush1.msra.mxu0 %v2368
    %2404 = vmatprep.subr.mxu0 0.0
    %2405 = vmatpush1.msra.mxu0 %v2367
    %2406 = vmatprep.subr.mxu0 0.0
    %2407 = vmatpush1.msra.mxu0 %v2366
    %2408 = vmatprep.subr.mxu0 0.0
    %2409 = vmatpush1.msra.mxu0 %v2365
    %2410 = vmatprep.subr.mxu0 0.0
    %2411 = vmatpush1.msra.mxu0 %v2364
    %2412 = vmatprep.subr.mxu0 0.0
    %2413 = vmatpush1.msra.mxu0 %v2363
    %2414 = vmatprep.subr.mxu0 0.0
    %2415 = vmatpush1.msra.mxu0 %v2362
    %2416 = vmatprep.subr.mxu0 0.0
    %2417 = vmatpush1.msra.mxu0 %v2361
    %2418 = vmatprep.subr.mxu0 0.0
    %2419 = vmatpush1.msra.mxu0 %v2360
    %2420 = vmatprep.subr.mxu0 0.0
    %2421 = vmatpush1.msra.mxu0 %v2359
    %2422 = vmatprep.subr.mxu0 0.0
    %2423 = vmatpush1.msra.mxu0 %v2358
    %2424 = vmatprep.subr.mxu0 0.0
    %2425 = vmatpush1.msra.mxu0 %v2357
    %2426 = vmatprep.subr.mxu0 0.0
    %2427 = vmatpush1.msra.mxu0 %v2356
    %2428 = vmatprep.subr.mxu0 0.0
    %2429 = vmatpush1.msra.mxu0 %v2355
    %2430 = vmatprep.subr.mxu0 0.0
    %2431 = vmatpush2.msra.mxu0 %v2386
    %2432 = vmatprep.subr.mxu0 0.0
    %2433 = vmatpush2.msra.mxu0 %v2385
    %2434 = vmatprep.subr.mxu0 0.0
    %2435 = vmatpush2.msra.mxu0 %v2384
    %2436 = vmatprep.subr.mxu0 0.0
    %2437 = vmatpush2.msra.mxu0 %v2383
    %2438 = vmatprep.subr.mxu0 0.0
    %2439 = vmatpush2.msra.mxu0 %v2382
    %2440 = vmatprep.subr.mxu0 0.0
    %2441 = vmatpush2.msra.mxu0 %v2381
    %2442 = vmatprep.subr.mxu0 0.0
    %2443 = vmatpush2.msra.mxu0 %v2380
    %2444 = vmatprep.subr.mxu0 0.0
    %2445 = vmatpush2.msra.mxu0 %v2379
    %2446 = vmatprep.subr.mxu0 0.0
    %2447 = vmatpush2.msra.mxu0 %v2378
    %2448 = vmatprep.subr.mxu0 0.0
    %2449 = vmatpush2.msra.mxu0 %v2377
    %2450 = vmatprep.subr.mxu0 0.0
    %2451 = vmatpush2.msra.mxu0 %v2376
    %2452 = vmatprep.subr.mxu0 0.0
    %2453 = vmatpush2.msra.mxu0 %v2375
    %2454 = vmatprep.subr.mxu0 0.0
    %2455 = vmatpush2.msra.mxu0 %v2374
    %2456 = vmatprep.subr.mxu0 0.0
    %2457 = vmatpush2.msra.mxu0 %v2373
    %2458 = vmatprep.subr.mxu0 0.0
    %2459 = vmatpush2.msra.mxu0 %v2372
    %2460 = vmatprep.subr.mxu0 0.0
    %2461 = vmatpush2.msra.mxu0 %v2371
    %2462 = vmatprep.mubr.f32.mxu0 %v2395
    %2463 = vmatmul.mubr.f32.gmra.mxu0 %v2394
    %v2464 = vpop.f32.mrf.mxu0
    %v2465 = vadd.f32 0.0, %v2464
    %v2466 = vpop.f32.mrf.mxu0
    %2467 = vdwg.mxu0
    %v2468 = vmul.f32 %v2465, %v2465
    %vm2469 = vcmask 517120
    %v2470 = vsel %vm2469, %v2468, 0.0
    %2471 = vadd.xlane.f32.xlu0 %v2470
    %v2472 = vpop.xlane.xlu0 %2471
    %v2473 = vrsqrt.pop %v2472
    %v2474 = vmul.f32 %v2472, %v2473
    %vm2475 = vcmp.eq.f32.partialorder %v2472, inf
    %v2476 = vsel %vm2475, %v2472, %v2474
    %vm2477 = vcmp.eq.f32.partialorder %v2472, 0.0
    %v2478 = vand.u32 %v2472, 2147483648
    %v2479 = vsel %vm2477, %v2478, %v2476
    %v2480 = vmax.f32 %v2479, 1e-12
    %v2481 = vrcp.pop %v2480
    %v2482 = vmul.f32 %v2465, %v2481
    %v2483 = vld [vmem:[%s9] sm:$0xff]
    %v2484 = vld [vmem:[%s9 + $0x8] sm:$0xff]
    %v2485 = vld [vmem:[%s9 + $0x10] sm:$0xff]
    %v2486 = vld [vmem:[%s9 + $0x18] sm:$0xff]
    %v2487 = vld [vmem:[%s9 + $0x20] sm:$0xff]
    %v2488 = vld [vmem:[%s9 + $0x28] sm:$0xff]
    %v2489 = vld [vmem:[%s9 + $0x30] sm:$0xff]
    %v2490 = vld [vmem:[%s9 + $0x38] sm:$0xff]
    %v2491 = vld [vmem:[%s9 + $0x40] sm:$0xff]
    %v2492 = vld [vmem:[%s9 + $0x48] sm:$0xff]
    %v2493 = vld [vmem:[%s9 + $0x50] sm:$0xff]
    %v2494 = vld [vmem:[%s9 + $0x58] sm:$0xff]
    %v2495 = vld [vmem:[%s9 + $0x60] sm:$0xff]
    %v2496 = vld [vmem:[%s9 + $0x68] sm:$0xff]
    %v2497 = vld [vmem:[%s9 + $0x70] sm:$0xff]
    %v2498 = vld [vmem:[%s9 + $0x78] sm:$0xff]
    %v2499 = vld [vmem:[%s2] sm:$0x3]
    %v2500 = vld [vmem:[%s10] sm:$0x3]
    %2502 = vset.pattern.permute.xlu0 0
    %2503 = vperm.xlu0 %2502, %v2499
    %v2504 = vpop.permute.xlu0 %2503
    %v2507 = vlaneseq
    %v2508 = vshrl.u32 %v2507, 7
    %v2509 = vsub.s32 0, %v2508
    %v2510 = vrot.slane %v2500, %v2509
    %v2511 = vlaneseq
    %v2512 = vshrl.u32 %v2511, 7
    %v2513 = vsub.s32 1, %v2512
    %v2514 = vrot.slane %v2500, %v2513
    %v2517 = vmul.f32 %v2504, %v2510
    %v2518 = vmul.f32 %v2504, %v2514
    %vm2519 = vcmask 523264
    %v2521 = vsel %vm2519, %v2351, 0
    %2523 = vmatprep.subr.mxu0 0.0
    %2524 = vmatpush1.msra.mxu0 0.0
    %2525 = vmatprep.subr.mxu0 0.0
    %2526 = vmatpush1.msra.mxu0 0.0
    %2527 = vmatprep.subr.mxu0 0.0
    %2528 = vmatpush1.msra.mxu0 0.0
    %2529 = vmatprep.subr.mxu0 0.0
    %2530 = vmatpush1.msra.mxu0 0.0
    %2531 = vmatprep.subr.mxu0 0.0
    %2532 = vmatpush1.msra.mxu0 0.0
    %2533 = vmatprep.subr.mxu0 0.0
    %2534 = vmatpush1.msra.mxu0 0.0
    %2535 = vmatprep.subr.mxu0 0.0
    %2536 = vmatpush1.msra.mxu0 0.0
    %2537 = vmatprep.subr.mxu0 0.0
    %2538 = vmatpush1.msra.mxu0 0.0
    %2539 = vmatprep.subr.mxu0 %v2498
    %2540 = vmatpush1.msra.mxu0 %v2497
    %2541 = vmatprep.subr.mxu0 %v2496
    %2542 = vmatpush1.msra.mxu0 %v2495
    %2543 = vmatprep.subr.mxu0 %v2494
    %2544 = vmatpush1.msra.mxu0 %v2493
    %2545 = vmatprep.subr.mxu0 %v2492
    %2546 = vmatpush1.msra.mxu0 %v2491
    %2547 = vmatprep.subr.mxu0 %v2490
    %2548 = vmatpush1.msra.mxu0 %v2489
    %2549 = vmatprep.subr.mxu0 %v2488
    %2550 = vmatpush1.msra.mxu0 %v2487
    %2551 = vmatprep.subr.mxu0 %v2486
    %2552 = vmatpush1.msra.mxu0 %v2485
    %2553 = vmatprep.subr.mxu0 %v2484
    %2554 = vmatpush1.msra.mxu0 %v2483
    %2555 = vmatprep.subr.mxu0 0.0
    %2556 = vmatpush2.msra.mxu0 0.0
    %2557 = vmatprep.subr.mxu0 0.0
    %2558 = vmatpush2.msra.mxu0 0.0
    %2559 = vmatprep.subr.mxu0 0.0
    %2560 = vmatpush2.msra.mxu0 0.0
    %2561 = vmatprep.subr.mxu0 0.0
    %2562 = vmatpush2.msra.mxu0 0.0
    %2563 = vmatprep.subr.mxu0 0.0
    %2564 = vmatpush2.msra.mxu0 0.0
    %2565 = vmatprep.subr.mxu0 0.0
    %2566 = vmatpush2.msra.mxu0 0.0
    %2567 = vmatprep.subr.mxu0 0.0
    %2568 = vmatpush2.msra.mxu0 0.0
    %2569 = vmatprep.subr.mxu0 0.0
    %2570 = vmatpush2.msra.mxu0 0.0
    %2571 = vmatprep.subr.mxu0 0.0
    %2572 = vmatpush2.msra.mxu0 0.0
    %2573 = vmatprep.subr.mxu0 0.0
    %2574 = vmatpush2.msra.mxu0 0.0
    %2575 = vmatprep.subr.mxu0 0.0
    %2576 = vmatpush2.msra.mxu0 0.0
    %2577 = vmatprep.subr.mxu0 0.0
    %2578 = vmatpush2.msra.mxu0 0.0
    %2579 = vmatprep.subr.mxu0 0.0
    %2580 = vmatpush2.msra.mxu0 0.0
    %2581 = vmatprep.subr.mxu0 0.0
    %2582 = vmatpush2.msra.mxu0 0.0
    %2583 = vmatprep.subr.mxu0 0.0
    %2584 = vmatpush2.msra.mxu0 0.0
    %2585 = vmatprep.subr.mxu0 0.0
    %2586 = vmatpush2.msra.mxu0 0.0
    %2587 = vmatprep.mubr.f32.mxu0 0.0
    %2588 = vmatmul.mubr.f32.gmra.mxu0 %v2521
    %v2589 = vpop.f32.mrf.mxu0
    %v2590 = vadd.f32 %v2517, %v2589
    %v2591 = vpop.f32.mrf.mxu0
    %v2592 = vadd.f32 %v2518, %v2591
    %2593 = vdwg.mxu0
    %v2594 = vld [vmem:[%s11] sm:$0xff]
    %v2595 = vld [vmem:[%s11 + $0x8] sm:$0xff]
    %v2596 = vld [vmem:[%s11 + $0x10] sm:$0xff]
    %v2597 = vld [vmem:[%s11 + $0x18] sm:$0xff]
    %v2598 = vld [vmem:[%s11 + $0x20] sm:$0xff]
    %v2599 = vld [vmem:[%s11 + $0x28] sm:$0xff]
    %v2600 = vld [vmem:[%s11 + $0x30] sm:$0xff]
    %v2601 = vld [vmem:[%s11 + $0x38] sm:$0xff]
    %v2602 = vld [vmem:[%s11 + $0x40] sm:$0xff]
    %v2603 = vld [vmem:[%s11 + $0x48] sm:$0xff]
    %v2604 = vld [vmem:[%s11 + $0x50] sm:$0xff]
    %v2605 = vld [vmem:[%s11 + $0x58] sm:$0xff]
    %v2606 = vld [vmem:[%s11 + $0x60] sm:$0xff]
    %v2607 = vld [vmem:[%s11 + $0x68] sm:$0xff]
    %v2608 = vld [vmem:[%s11 + $0x70] sm:$0xff]
    %v2609 = vld [vmem:[%s11 + $0x78] sm:$0xff]
    %v2611 = vsel %vm2519, %v2482, 0
    %2613 = vmatprep.subr.mxu0 0.0
    %2614 = vmatpush1.msra.mxu0 0.0
    %2615 = vmatprep.subr.mxu0 0.0
    %2616 = vmatpush1.msra.mxu0 0.0
    %2617 = vmatprep.subr.mxu0 0.0
    %2618 = vmatpush1.msra.mxu0 0.0
    %2619 = vmatprep.subr.mxu0 0.0
    %2620 = vmatpush1.msra.mxu0 0.0
    %2621 = vmatprep.subr.mxu0 0.0
    %2622 = vmatpush1.msra.mxu0 0.0
    %2623 = vmatprep.subr.mxu0 0.0
    %2624 = vmatpush1.msra.mxu0 0.0
    %2625 = vmatprep.subr.mxu0 0.0
    %2626 = vmatpush1.msra.mxu0 0.0
    %2627 = vmatprep.subr.mxu0 0.0
    %2628 = vmatpush1.msra.mxu0 0.0
    %2629 = vmatprep.subr.mxu0 %v2609
    %2630 = vmatpush1.msra.mxu0 %v2608
    %2631 = vmatprep.subr.mxu0 %v2607
    %2632 = vmatpush1.msra.mxu0 %v2606
    %2633 = vmatprep.subr.mxu0 %v2605
    %2634 = vmatpush1.msra.mxu0 %v2604
    %2635 = vmatprep.subr.mxu0 %v2603
    %2636 = vmatpush1.msra.mxu0 %v2602
    %2637 = vmatprep.subr.mxu0 %v2601
    %2638 = vmatpush1.msra.mxu0 %v2600
    %2639 = vmatprep.subr.mxu0 %v2599
    %2640 = vmatpush1.msra.mxu0 %v2598
    %2641 = vmatprep.subr.mxu0 %v2597
    %2642 = vmatpush1.msra.mxu0 %v2596
    %2643 = vmatprep.subr.mxu0 %v2595
    %2644 = vmatpush1.msra.mxu0 %v2594
    %2645 = vmatprep.subr.mxu0 0.0
    %2646 = vmatpush2.msra.mxu0 0.0
    %2647 = vmatprep.subr.mxu0 0.0
    %2648 = vmatpush2.msra.mxu0 0.0
    %2649 = vmatprep.subr.mxu0 0.0
    %2650 = vmatpush2.msra.mxu0 0.0
    %2651 = vmatprep.subr.mxu0 0.0
    %2652 = vmatpush2.msra.mxu0 0.0
    %2653 = vmatprep.subr.mxu0 0.0
    %2654 = vmatpush2.msra.mxu0 0.0
    %2655 = vmatprep.subr.mxu0 0.0
    %2656 = vmatpush2.msra.mxu0 0.0
    %2657 = vmatprep.subr.mxu0 0.0
    %2658 = vmatpush2.msra.mxu0 0.0
    %2659 = vmatprep.subr.mxu0 0.0
    %2660 = vmatpush2.msra.mxu0 0.0
    %2661 = vmatprep.subr.mxu0 0.0
    %2662 = vmatpush2.msra.mxu0 0.0
    %2663 = vmatprep.subr.mxu0 0.0
    %2664 = vmatpush2.msra.mxu0 0.0
    %2665 = vmatprep.subr.mxu0 0.0
    %2666 = vmatpush2.msra.mxu0 0.0
    %2667 = vmatprep.subr.mxu0 0.0
    %2668 = vmatpush2.msra.mxu0 0.0
    %2669 = vmatprep.subr.mxu0 0.0
    %2670 = vmatpush2.msra.mxu0 0.0
    %2671 = vmatprep.subr.mxu0 0.0
    %2672 = vmatpush2.msra.mxu0 0.0
    %2673 = vmatprep.subr.mxu0 0.0
    %2674 = vmatpush2.msra.mxu0 0.0
    %2675 = vmatprep.subr.mxu0 0.0
    %2676 = vmatpush2.msra.mxu0 0.0
    %2677 = vmatprep.mubr.f32.mxu0 0.0
    %2678 = vmatmul.mubr.f32.gmra.mxu0 %v2611
    %v2679 = vpop.f32.mrf.mxu0
    %v2680 = vadd.f32 0.0, %v2679
    %v2681 = vpop.f32.mrf.mxu0
    %v2682 = vadd.f32 0.0, %v2681
    %2683 = vdwg.mxu0
    %v2684 = vadd.f32 %v2590, %v2680
    %v2685 = vadd.f32 %v2592, %v2682
    %v2686 = vld [vmem:[%s12] sm:$0x3]
    %v2688 = vlaneseq
    %v2689 = vshrl.u32 %v2688, 7
    %v2690 = vsub.s32 0, %v2689
    %v2691 = vrot.slane %v2686, %v2690
    %v2692 = vlaneseq
    %v2693 = vshrl.u32 %v2692, 7
    %v2694 = vsub.s32 1, %v2693
    %v2695 = vrot.slane %v2686, %v2694
    %v2698 = vadd.f32 %v2684, %v2691
    %v2699 = vadd.f32 %v2685, %v2695
    %v2700 = vmax.f32 %v2698, 0.0
    %v2701 = vmax.f32 %v2699, 0.0
    %v2702 = vld [vmem:[%s13] sm:$0xff]
    %v2703 = vld [vmem:[%s13 + $0x8] sm:$0xff]
    %v2704 = vld [vmem:[%s13 + $0x10] sm:$0xff]
    %v2705 = vld [vmem:[%s13 + $0x18] sm:$0xff]
    %v2706 = vld [vmem:[%s13 + $0x20] sm:$0xff]
    %v2707 = vld [vmem:[%s13 + $0x28] sm:$0xff]
    %v2708 = vld [vmem:[%s13 + $0x30] sm:$0xff]
    %v2709 = vld [vmem:[%s13 + $0x38] sm:$0xff]
    %v2710 = vld [vmem:[%s13 + $0x40] sm:$0xff]
    %v2711 = vld [vmem:[%s13 + $0x48] sm:$0xff]
    %v2712 = vld [vmem:[%s13 + $0x50] sm:$0xff]
    %v2713 = vld [vmem:[%s13 + $0x58] sm:$0xff]
    %v2714 = vld [vmem:[%s13 + $0x60] sm:$0xff]
    %v2715 = vld [vmem:[%s13 + $0x68] sm:$0xff]
    %v2716 = vld [vmem:[%s13 + $0x70] sm:$0xff]
    %v2717 = vld [vmem:[%s13 + $0x78] sm:$0xff]
    %v2718 = vld [vmem:[%s13 + $0x80] sm:$0xff]
    %v2719 = vld [vmem:[%s13 + $0x88] sm:$0xff]
    %v2720 = vld [vmem:[%s13 + $0x90] sm:$0xff]
    %v2721 = vld [vmem:[%s13 + $0x98] sm:$0xff]
    %v2722 = vld [vmem:[%s13 + $0xa0] sm:$0xff]
    %v2723 = vld [vmem:[%s13 + $0xa8] sm:$0xff]
    %v2724 = vld [vmem:[%s13 + $0xb0] sm:$0xff]
    %v2725 = vld [vmem:[%s13 + $0xb8] sm:$0xff]
    %v2726 = vld [vmem:[%s13 + $0xc0] sm:$0xff]
    %v2727 = vld [vmem:[%s13 + $0xc8] sm:$0xff]
    %v2728 = vld [vmem:[%s13 + $0xd0] sm:$0xff]
    %v2729 = vld [vmem:[%s13 + $0xd8] sm:$0xff]
    %v2730 = vld [vmem:[%s13 + $0xe0] sm:$0xff]
    %v2731 = vld [vmem:[%s13 + $0xe8] sm:$0xff]
    %v2732 = vld [vmem:[%s13 + $0xf0] sm:$0xff]
    %v2733 = vld [vmem:[%s13 + $0xf8] sm:$0xff]
    %v2734 = vld [vmem:[%s14] sm:$0x1]
    %v2736 = vlaneseq
    %v2737 = vshrl.u32 %v2736, 7
    %v2738 = vsub.s32 0, %v2737
    %v2739 = vrot.slane %v2734, %v2738
    %2741 = vmatprep.subr.mxu0 0.0
    %2742 = vmatpush1.msra.mxu0 %v2717
    %2743 = vmatprep.subr.mxu0 0.0
    %2744 = vmatpush1.msra.mxu0 %v2716
    %2745 = vmatprep.subr.mxu0 0.0
    %2746 = vmatpush1.msra.mxu0 %v2715
    %2747 = vmatprep.subr.mxu0 0.0
    %2748 = vmatpush1.msra.mxu0 %v2714
    %2749 = vmatprep.subr.mxu0 0.0
    %2750 = vmatpush1.msra.mxu0 %v2713
    %2751 = vmatprep.subr.mxu0 0.0
    %2752 = vmatpush1.msra.mxu0 %v2712
    %2753 = vmatprep.subr.mxu0 0.0
    %2754 = vmatpush1.msra.mxu0 %v2711
    %2755 = vmatprep.subr.mxu0 0.0
    %2756 = vmatpush1.msra.mxu0 %v2710
    %2757 = vmatprep.subr.mxu0 0.0
    %2758 = vmatpush1.msra.mxu0 %v2709
    %2759 = vmatprep.subr.mxu0 0.0
    %2760 = vmatpush1.msra.mxu0 %v2708
    %2761 = vmatprep.subr.mxu0 0.0
    %2762 = vmatpush1.msra.mxu0 %v2707
    %2763 = vmatprep.subr.mxu0 0.0
    %2764 = vmatpush1.msra.mxu0 %v2706
    %2765 = vmatprep.subr.mxu0 0.0
    %2766 = vmatpush1.msra.mxu0 %v2705
    %2767 = vmatprep.subr.mxu0 0.0
    %2768 = vmatpush1.msra.mxu0 %v2704
    %2769 = vmatprep.subr.mxu0 0.0
    %2770 = vmatpush1.msra.mxu0 %v2703
    %2771 = vmatprep.subr.mxu0 0.0
    %2772 = vmatpush1.msra.mxu0 %v2702
    %2773 = vmatprep.subr.mxu0 0.0
    %2774 = vmatpush2.msra.mxu0 %v2733
    %2775 = vmatprep.subr.mxu0 0.0
    %2776 = vmatpush2.msra.mxu0 %v2732
    %2777 = vmatprep.subr.mxu0 0.0
    %2778 = vmatpush2.msra.mxu0 %v2731
    %2779 = vmatprep.subr.mxu0 0.0
    %2780 = vmatpush2.msra.mxu0 %v2730
    %2781 = vmatprep.subr.mxu0 0.0
    %2782 = vmatpush2.msra.mxu0 %v2729
    %2783 = vmatprep.subr.mxu0 0.0
    %2784 = vmatpush2.msra.mxu0 %v2728
    %2785 = vmatprep.subr.mxu0 0.0
    %2786 = vmatpush2.msra.mxu0 %v2727
    %2787 = vmatprep.subr.mxu0 0.0
    %2788 = vmatpush2.msra.mxu0 %v2726
    %2789 = vmatprep.subr.mxu0 0.0
    %2790 = vmatpush2.msra.mxu0 %v2725
    %2791 = vmatprep.subr.mxu0 0.0
    %2792 = vmatpush2.msra.mxu0 %v2724
    %2793 = vmatprep.subr.mxu0 0.0
    %2794 = vmatpush2.msra.mxu0 %v2723
    %2795 = vmatprep.subr.mxu0 0.0
    %2796 = vmatpush2.msra.mxu0 %v2722
    %2797 = vmatprep.subr.mxu0 0.0
    %2798 = vmatpush2.msra.mxu0 %v2721
    %2799 = vmatprep.subr.mxu0 0.0
    %2800 = vmatpush2.msra.mxu0 %v2720
    %2801 = vmatprep.subr.mxu0 0.0
    %2802 = vmatpush2.msra.mxu0 %v2719
    %2803 = vmatprep.subr.mxu0 0.0
    %2804 = vmatpush2.msra.mxu0 %v2718
    %2805 = vmatprep.mubr.f32.mxu0 %v2701
    %2806 = vmatmul.mubr.f32.gmra.mxu0 %v2700
    %v2807 = vpop.f32.mrf.mxu0
    %v2808 = vadd.f32 %v2739, %v2807
    %v2809 = vpop.f32.mrf.mxu0
    %2810 = vdwg.mxu0
    %2811 = vst [vmem:[#allocation2] sm:$0x3] %v2808
    // Predicated region
    $region62: #{forward.1} parent=1 // pred_check
      _
    $region63: #{forward.1} parent=1 // pred_check_branch
      %2813 = sbr.rel (0) target = $region65
    $region64: #{forward.1} parent=1 // pred_region
      %s2815 = ssub.s32 32, 32
      %2816 = vsyncadd [#allocation3], %s2815
      %s2818 = sshll.u32 [#allocation2], 4
      %s2819 = int_to_ptr.vmem [resolvable:$true] %s2818
      %2821 = dma.vmem_to_hbm [thread:$0]  %s2819, 32, %s15, [#allocation3]
    $region65: #{forward.1} parent=1 // pred_fallthru
      _
    // Predicated region
    $region66: #{forward.1} parent=1 // pred_check
      _
    $region67: #{forward.1} parent=1 // pred_check_branch
      %2823 = sbr.rel (0) target = $region69
    $region68: #{forward.1} parent=1 // pred_region
      %2824 = dma.done [#allocation3], 32
    $region69: #{forward.1} parent=1 // pred_fallthru
      _
    %2825 = vsyncpa [#allocation3], 1

</llo_original>
